<compile_context>
chip_gen: v6e
topology: v6e:2x2x1
jax: 0.10.0
libtpu: 0.0.40
codegen_flags: <defaults>
</compile_context>

<pallas_src>
import functools

import jax
import jax.numpy as jnp
import numpy as np
from jax.experimental import pallas as pl
from jax.experimental.pallas import tpu as pltpu


def _round_up(x, m):
    return (x + m - 1) // m * m


def _cdiv(a, b):
    return (a + b - 1) // b


def _vmem_capacity_bytes():
    """Best-effort physical VMEM query (128 MiB v5e/v6e, 64 MiB v7x)."""
    try:
        return int(pltpu.get_tpu_info().vmem_capacity_bytes)
    except Exception:
        return 128 * 1024 * 1024


def lstm_chunk_kernel(nvalid_ref, len_ref, gx_ref, whh_ref, out_ref,
                      h_ref, c_ref, *, unroll):
    """One grid step = one (batch tile, time chunk) of the LSTM recurrence.

    nvalid_ref : (1,)           int32  SMEM  number of live time chunks
    len_ref    : (Bt, 1)        int32  per-sequence lengths (batch tile)
    gx_ref     : (Tc, Bt, 4Hp)  f32/bf16 pre-activations x@W_ih^T + b
    whh_ref    : (Hp, 4Hp)      f32/bf16 recurrent weights (constant block)
    out_ref    : (Bt, Hp)       f32    final hidden state (resident output)
    h_ref/c_ref: (Bt, Hp)       f32    VMEM scratch carrying the LSTM state
    """
    chunk = pl.program_id(1)
    Tc = gx_ref.shape[0]
    Hp = h_ref.shape[-1]

    @pl.when(chunk == 0)
    def _init():
        h_ref[...] = jnp.zeros_like(h_ref)
        c_ref[...] = jnp.zeros_like(c_ref)

    # Skip chunks lying entirely past the longest sequence (index_map is also
    # clamped there, so the pipeline does not re-DMA gx for them).
    @pl.when(chunk < nvalid_ref[0])
    def _body():
        lens = len_ref[...]            # (Bt, 1) int32
        whh = whh_ref[...]             # (Hp, 4Hp)
        t0 = chunk * Tc

        def sigmoid(x):                # exact: one tanh (EUP) + cheap VPU ops
            return 0.5 * (jnp.tanh(0.5 * x) + 1.0)

        def step(tt, carry):
            h, c = carry
            # TODO(synk): weight-stationary MXU via pltpu.matmul_push_rhs /
            # matmul_acc_lhs / matmul_pop if the RHS is re-pushed every step.
            gates = gx_ref[tt].astype(jnp.float32) + jnp.dot(
                h.astype(whh.dtype), whh, preferred_element_type=jnp.float32)
            i_g = sigmoid(gates[:, 0 * Hp:1 * Hp])
            f_g = sigmoid(gates[:, 1 * Hp:2 * Hp])
            g_g = jnp.tanh(gates[:, 2 * Hp:3 * Hp])
            o_g = sigmoid(gates[:, 3 * Hp:4 * Hp])
            c_new = f_g * c + i_g * g_g
            h_new = o_g * jnp.tanh(c_new)
            # Advance only while t < length[b]; otherwise hold (packed h_n).
            mask = (t0 + tt) < lens    # (Bt, 1) bool, broadcasts over Hp
            return jnp.where(mask, h_new, h), jnp.where(mask, c_new, c)

        h, c = jax.lax.fori_loop(0, Tc, step, (h_ref[...], c_ref[...]),
                                 unroll=unroll)
        h_ref[...] = h
        c_ref[...] = c
        out_ref[...] = h.astype(out_ref.dtype)


def encoder_lstm_forward(sent, sent_l, w_ih, w_hh, b_ih, b_hh, *,
                         time_chunk=None, batch_tiles=None,
                         matmul_dtype=jnp.bfloat16, gx_dtype=jnp.bfloat16,
                         inner_unroll=8):
    """sent: (T, B, E) f32, sent_l: (B,) int.  Returns (B, H) f32.

    matmul_dtype : operand dtype of the in-loop recurrent matmul (bf16 is
                   native on v5e/v6e/v7x MXUs; accumulation is always f32).
    gx_dtype     : storage dtype of the streamed pre-activations.
    time_chunk   : timesteps per grid step (None -> derived from VMEM budget).
    batch_tiles  : leading parallel batch tiles (None -> 2 if Bp >= 16).
    """
    T, B, E = sent.shape
    H = w_hh.shape[1]

    Hp = _round_up(H, 128)             # lane-align each gate block
    Bp = _round_up(B, 8)               # sublane-align the batch

    # Batch tiling: >=2 sublane-aligned tiles feed both v7x TensorCores via a
    # leading "parallel" grid axis (negligible overhead on 1-TC chips).
    if batch_tiles is None:
        batch_tiles = 2 if Bp >= 16 else 1
    n_btiles = max(1, int(batch_tiles))
    Bt = _round_up(_cdiv(Bp, n_btiles), 8)
    Bp = Bt * n_btiles

    gx_item = jnp.dtype(gx_dtype).itemsize
    mm_item = jnp.dtype(matmul_dtype).itemsize

    # Generation-aware time chunk: double-buffered gx stream + resident
    # W_hh / out / h / c must fit the per-generation VMEM budget.
    vmem_cap = _vmem_capacity_bytes()
    vmem_limit = (vmem_cap * 7) // 8       # ~112 MiB v5e/v6e, ~56 MiB v7x
    budget = (vmem_cap * 3) // 4           # ~96 MiB v5e/v6e,  ~48 MiB v7x
    fixed = (2 * Hp * 4 * Hp * mm_item     # W_hh (conservatively x2 buffers)
             + 2 * Bt * Hp * 4             # output block
             + 2 * Bt * Hp * 4             # h / c scratch
             + 2 * Bt * 4)                 # lengths
    per_step = 2 * Bt * 4 * Hp * gx_item   # double-buffered gx per timestep
    if time_chunk is None:
        Tc = max(1, (budget - fixed) // per_step)
        Tc = int(min(Tc, T, 256))
    else:
        Tc = max(1, min(int(time_chunk), T))
    Tp = _round_up(T, Tc)
    n_chunks = Tp // Tc
    unroll = max(1, min(int(inner_unroll), Tc))

    f32 = jnp.float32

    # ---- hoisted input projection: one large matmul, no recurrent dep ----
    # Per-gate H -> Hp padding is fused into the projection (pad W_ih / bias
    # before the einsum) so gx is written to HBM exactly once, already
    # gate-padded and in gx_dtype.  Zero-padded gate lanes keep padded hidden
    # lanes exactly 0; padded batch rows have length 0 and never update;
    # padded timesteps are masked because t >= every real length.
    w_ih4 = jnp.pad(jnp.asarray(w_ih, f32).reshape(4, H, E),
                    ((0, 0), (0, Hp - H), (0, 0)))            # (4, Hp, E)
    bias4 = jnp.pad(jnp.asarray(b_ih + b_hh, f32).reshape(4, H),
                    ((0, 0), (0, Hp - H)))                    # (4, Hp)
    sent_p = jnp.pad(jnp.asarray(sent, f32),
                     ((0, Tp - T), (0, Bp - B), (0, 0)))      # (Tp, Bp, E)
    gx = jnp.einsum('tbe,ghe->tbgh', sent_p, w_ih4) + bias4   # (Tp, Bp, 4, Hp)
    gx = gx.astype(gx_dtype).reshape(Tp, Bp, 4 * Hp)

    whh_t = jnp.pad(jnp.asarray(w_hh, f32).T.reshape(H, 4, H),
                    ((0, Hp - H), (0, 0), (0, Hp - H)))
    whh_t = whh_t.reshape(Hp, 4 * Hp).astype(matmul_dtype)    # (Hp, 4Hp)

    lens = jnp.pad(jnp.asarray(sent_l, jnp.int32), (0, Bp - B)).reshape(Bp, 1)

    # Number of chunks containing live timesteps (scalar-prefetched); chunks
    # past it are skipped: clamped index_map -> no re-DMA, pl.when -> no work.
    nvalid = (jnp.max(jnp.asarray(sent_l, jnp.int32)) + Tc - 1) // Tc
    nvalid = jnp.clip(nvalid, 1, n_chunks).astype(jnp.int32).reshape(1)

    kernel = functools.partial(lstm_chunk_kernel, unroll=unroll)

    out = pl.pallas_call(
        kernel,
        out_shape=jax.ShapeDtypeStruct((Bp, Hp), jnp.float32),
        grid_spec=pltpu.PrefetchScalarGridSpec(
            num_scalar_prefetch=1,
            grid=(n_btiles, n_chunks),
            in_specs=[
                pl.BlockSpec((Bt, 1), lambda b, c, nv: (b, 0)),       # lengths
                pl.BlockSpec((Tc, Bt, 4 * Hp),
                             lambda b, c, nv: (jnp.minimum(c, nv[0] - 1), b, 0)),
                pl.BlockSpec((Hp, 4 * Hp), lambda b, c, nv: (0, 0)),  # W_hh^T
            ],
            out_specs=pl.BlockSpec((Bt, Hp), lambda b, c, nv: (b, 0)),
            scratch_shapes=[
                pltpu.VMEM((Bt, Hp), jnp.float32),   # h state
                pltpu.VMEM((Bt, Hp), jnp.float32),   # c state
            ],
        ),
        compiler_params=pltpu.CompilerParams(
            dimension_semantics=("parallel", "arbitrary"),
            vmem_limit_bytes=int(vmem_limit)),
    )(nvalid, lens, gx, whh_t)

    return out[:B, :H]


def encoder_lstm_ref(sent, sent_l, w_ih, w_hh, b_ih, b_hh):
    """Pure-JAX reference (same math as torch.nn.LSTM + pack_padded h_n)."""
    T, B, E = sent.shape
    H = w_hh.shape[1]

    def step(carry, inp):
        h, c = carry
        x, t = inp
        gates = x @ w_ih.T + h @ w_hh.T + b_ih + b_hh
        i_g, f_g, g_g, o_g = jnp.split(gates, 4, axis=-1)
        i_g = jax.nn.sigmoid(i_g)
        f_g = jax.nn.sigmoid(f_g)
        g_g = jnp.tanh(g_g)
        o_g = jax.nn.sigmoid(o_g)
        c_new = f_g * c + i_g * g_g
        h_new = o_g * jnp.tanh(c_new)
        mask = (t < sent_l)[:, None]
        return (jnp.where(mask, h_new, h), jnp.where(mask, c_new, c)), None

    init = (jnp.zeros((B, H), jnp.float32), jnp.zeros((B, H), jnp.float32))
    (h, _), _ = jax.lax.scan(step, init, (sent, jnp.arange(T)))
    return h


if __name__ == "__main__":
    # Small shapes consistent with the module: seq=8, batch=4, emb=16, enc=32.
    T, B, E, H = 8, 4, 16, 32

    key = jax.random.PRNGKey(0)
    k_sent, k_wih, k_whh, k_bih, k_bhh = jax.random.split(key, 5)

    sent = jax.random.normal(k_sent, (T, B, E), dtype=jnp.float32)
    sent_l = jnp.array([8, 3, 5, 1], dtype=jnp.int32)   # per-sequence lengths

    # Deterministic LSTM params, PyTorch-style U(-1/sqrt(H), 1/sqrt(H)),
    # gate order [i, f, g, o].
    s = 1.0 / np.sqrt(H)
    w_ih = jax.random.uniform(k_wih, (4 * H, E), jnp.float32, -s, s)
    w_hh = jax.random.uniform(k_whh, (4 * H, H), jnp.float32, -s, s)
    b_ih = jax.random.uniform(k_bih, (4 * H,), jnp.float32, -s, s)
    b_hh = jax.random.uniform(k_bhh, (4 * H,), jnp.float32, -s, s)

    ref = jax.block_until_ready(
        encoder_lstm_ref(sent, sent_l, w_ih, w_hh, b_ih, b_hh))

    # Exact f32 path (both the gx stream and the recurrent matmul in f32).
    out_f32 = jax.block_until_ready(
        encoder_lstm_forward(sent, sent_l, w_ih, w_hh, b_ih, b_hh,
                             matmul_dtype=jnp.float32, gx_dtype=jnp.float32))
    np.testing.assert_allclose(np.asarray(out_f32), np.asarray(ref),
                               rtol=1e-4, atol=1e-4)

    # Default path: bf16 gx stream + bf16 recurrent matmul, f32 accumulation
    # and f32 h/c state (fast path on v5e/v6e/v7x).
    out_bf16 = jax.block_until_ready(
        encoder_lstm_forward(sent, sent_l, w_ih, w_hh, b_ih, b_hh))
    np.testing.assert_allclose(np.asarray(out_bf16), np.asarray(ref),
                               rtol=5e-2, atol=5e-2)

    print("KERNEL_OK")
</pallas_src>

<mosaic_0001>
module attributes {stable_mosaic.version = 11 : i64} {
  func.func @lstm_chunk_kernel(%arg0: i32, %arg1: i32, %arg2: memref<1xi32, #tpu.memory_space<smem>>, %arg3: memref<8x1xi32, #tpu.memory_space<vmem>>, %arg4: memref<8x8x512xf32, #tpu.memory_space<vmem>>, %arg5: memref<128x512xf32, #tpu.memory_space<vmem>>, %arg6: memref<8x128xf32, #tpu.memory_space<vmem>>, %arg7: memref<8x128xf32, #tpu.memory_space<vmem>>, %arg8: memref<8x128xf32, #tpu.memory_space<vmem>>) attributes {dimension_semantics = [#tpu.dimension_semantics<parallel>, #tpu.dimension_semantics<arbitrary>], iteration_bounds = array<i64: 1, 1>, scalar_prefetch = 1 : i64, scratch_operands = 2 : i64, tpu.core_type = #tpu.core_type<tc>, window_params = [{transform_indices = @transform_0, window_bounds = array<i64: 8, 1>}, {transform_indices = @transform_1, window_bounds = array<i64: 8, 8, 512>}, {pipeline_mode = #tpu.pipeline_mode<synchronous>, transform_indices = @transform_2, window_bounds = array<i64: 128, 512>}, {transform_indices = @transform_3, window_bounds = array<i64: 8, 128>}]} {
    %c0_i32 = arith.constant 0 : i32
    %0 = arith.cmpi eq, %arg1, %c0_i32 : i32
    %1 = arith.extui %0 : i1 to i32
    %c0_i32_0 = arith.constant 0 : i32
    %2 = arith.cmpi ne, %1, %c0_i32_0 : i32
    scf.if %2 {
      %cst = arith.constant 0.000000e+00 : f32
      %7 = vector.broadcast %cst : f32 to vector<8x128xf32>
      %c0_2 = arith.constant 0 : index
      %c0_3 = arith.constant 0 : index
      %8 = vector.load %arg7[%c0_2, %c0_3] : memref<8x128xf32, #tpu.memory_space<vmem>>, vector<8x128xf32>
      tpu.vector_store %arg7[%c0_2, %c0_3], %7 {strides = array<i32>} : memref<8x128xf32, #tpu.memory_space<vmem>>, vector<8x128xf32>,
      %cst_4 = arith.constant 0.000000e+00 : f32
      %9 = vector.broadcast %cst_4 : f32 to vector<8x128xf32>
      %c0_5 = arith.constant 0 : index
      %c0_6 = arith.constant 0 : index
      %10 = vector.load %arg8[%c0_5, %c0_6] : memref<8x128xf32, #tpu.memory_space<vmem>>, vector<8x128xf32>
      tpu.vector_store %arg8[%c0_5, %c0_6], %9 {strides = array<i32>} : memref<8x128xf32, #tpu.memory_space<vmem>>, vector<8x128xf32>,
    } else {
    }
    %c0 = arith.constant 0 : index
    %3 = memref.load %arg2[%c0] : memref<1xi32, #tpu.memory_space<smem>>
    %4 = arith.cmpi slt, %arg1, %3 : i32
    %5 = arith.extui %4 : i1 to i32
    %c0_i32_1 = arith.constant 0 : i32
    %6 = arith.cmpi ne, %5, %c0_i32_1 : i32
    scf.if %6 {
      %c0_2 = arith.constant 0 : index
      %c0_3 = arith.constant 0 : index
      %7 = vector.load %arg3[%c0_2, %c0_3] : memref<8x1xi32, #tpu.memory_space<vmem>>, vector<8x1xi32>
      %c0_4 = arith.constant 0 : index
      %c0_5 = arith.constant 0 : index
      %8 = vector.load %arg5[%c0_4, %c0_5] : memref<128x512xf32, #tpu.memory_space<vmem>>, vector<128x512xf32>
      %c8_i32 = arith.constant 8 : i32
      %9 = arith.muli %arg1, %c8_i32 : i32
      %c0_6 = arith.constant 0 : index
      %c0_7 = arith.constant 0 : index
      %10 = vector.load %arg7[%c0_6, %c0_7] : memref<8x128xf32, #tpu.memory_space<vmem>>, vector<8x128xf32>
      %c0_8 = arith.constant 0 : index
      %c0_9 = arith.constant 0 : index
      %11 = vector.load %arg8[%c0_8, %c0_9] : memref<8x128xf32, #tpu.memory_space<vmem>>, vector<8x128xf32>
      %c0_i32_10 = arith.constant 0 : i32
      %12 = arith.index_cast %c0_i32_10 : i32 to index
      %c0_11 = arith.constant 0 : index
      %c0_12 = arith.constant 0 : index
      %13 = vector.load %arg4[%12, %c0_11, %c0_12] : memref<8x8x512xf32, #tpu.memory_space<vmem>>, vector<1x8x512xf32>
      %14 = vector.shape_cast %13 : vector<1x8x512xf32> to vector<8x512xf32>
      %cst = arith.constant dense<0.000000e+00> : vector<8x512xf32>
      %15 = tpu.matmul %10, %8, %cst {dimension_numbers = #tpu.dot_dimension_numbers<[1], [0], [0], [1], [0, 0, 1, 1], [], []>} : vector<8x128xf32>, vector<128x512xf32>, vector<8x512xf32> -> vector<8x512xf32>
      %16 = arith.addf %14, %15 : vector<8x512xf32>
      %17 = vector.extract_strided_slice %16 {offsets = [0, 0], sizes = [8, 128], strides = [1, 1]} : vector<8x512xf32> to vector<8x128xf32>
      %cst_13 = arith.constant 5.000000e-01 : f32
      %18 = vector.broadcast %cst_13 : f32 to vector<8x128xf32>
      %19 = arith.mulf %18, %17 : vector<8x128xf32>
      %20 = math.tanh %19 : vector<8x128xf32>
      %cst_14 = arith.constant 1.000000e+00 : f32
      %21 = vector.broadcast %cst_14 : f32 to vector<8x128xf32>
      %22 = arith.addf %20, %21 : vector<8x128xf32>
      %cst_15 = arith.constant 5.000000e-01 : f32
      %23 = vector.broadcast %cst_15 : f32 to vector<8x128xf32>
      %24 = arith.mulf %23, %22 : vector<8x128xf32>
      %25 = vector.extract_strided_slice %16 {offsets = [0, 128], sizes = [8, 128], strides = [1, 1]} : vector<8x512xf32> to vector<8x128xf32>
      %cst_16 = arith.constant 5.000000e-01 : f32
      %26 = vector.broadcast %cst_16 : f32 to vector<8x128xf32>
      %27 = arith.mulf %26, %25 : vector<8x128xf32>
      %28 = math.tanh %27 : vector<8x128xf32>
      %cst_17 = arith.constant 1.000000e+00 : f32
      %29 = vector.broadcast %cst_17 : f32 to vector<8x128xf32>
      %30 = arith.addf %28, %29 : vector<8x128xf32>
      %cst_18 = arith.constant 5.000000e-01 : f32
      %31 = vector.broadcast %cst_18 : f32 to vector<8x128xf32>
      %32 = arith.mulf %31, %30 : vector<8x128xf32>
      %33 = vector.extract_strided_slice %16 {offsets = [0, 256], sizes = [8, 128], strides = [1, 1]} : vector<8x512xf32> to vector<8x128xf32>
      %34 = math.tanh %33 : vector<8x128xf32>
      %35 = vector.extract_strided_slice %16 {offsets = [0, 384], sizes = [8, 128], strides = [1, 1]} : vector<8x512xf32> to vector<8x128xf32>
      %cst_19 = arith.constant 5.000000e-01 : f32
      %36 = vector.broadcast %cst_19 : f32 to vector<8x128xf32>
      %37 = arith.mulf %36, %35 : vector<8x128xf32>
      %38 = math.tanh %37 : vector<8x128xf32>
      %cst_20 = arith.constant 1.000000e+00 : f32
      %39 = vector.broadcast %cst_20 : f32 to vector<8x128xf32>
      %40 = arith.addf %38, %39 : vector<8x128xf32>
      %cst_21 = arith.constant 5.000000e-01 : f32
      %41 = vector.broadcast %cst_21 : f32 to vector<8x128xf32>
      %42 = arith.mulf %41, %40 : vector<8x128xf32>
      %43 = arith.mulf %32, %11 : vector<8x128xf32>
      %44 = arith.mulf %24, %34 : vector<8x128xf32>
      %45 = arith.addf %43, %44 : vector<8x128xf32>
      %46 = math.tanh %45 : vector<8x128xf32>
      %47 = arith.mulf %42, %46 : vector<8x128xf32>
      %48 = arith.addi %9, %c0_i32_10 : i32
      %49 = vector.broadcast %48 : i32 to vector<8x1xi32>
      %50 = arith.cmpi slt, %49, %7 : vector<8x1xi32>
      %51 = vector.shape_cast %50 : vector<8x1xi1> to vector<8x1xi1>
      %52 = vector.broadcast %51 : vector<8x1xi1> to vector<8x128xi1>
      %53 = arith.select %52, %47, %10 : vector<8x128xi1>, vector<8x128xf32>
      %54 = vector.shape_cast %50 : vector<8x1xi1> to vector<8x1xi1>
      %55 = vector.broadcast %54 : vector<8x1xi1> to vector<8x128xi1>
      %56 = arith.select %55, %45, %11 : vector<8x128xi1>, vector<8x128xf32>
      %c1_i32 = arith.constant 1 : i32
      %57 = arith.index_cast %c1_i32 : i32 to index
      %c0_22 = arith.constant 0 : index
      %c0_23 = arith.constant 0 : index
      %58 = vector.load %arg4[%57, %c0_22, %c0_23] : memref<8x8x512xf32, #tpu.memory_space<vmem>>, vector<1x8x512xf32>
      %59 = vector.shape_cast %58 : vector<1x8x512xf32> to vector<8x512xf32>
      %cst_24 = arith.constant dense<0.000000e+00> : vector<8x512xf32>
      %60 = tpu.matmul %53, %8, %cst_24 {dimension_numbers = #tpu.dot_dimension_numbers<[1], [0], [0], [1], [0, 0, 1, 1], [], []>} : vector<8x128xf32>, vector<128x512xf32>, vector<8x512xf32> -> vector<8x512xf32>
      %61 = arith.addf %59, %60 : vector<8x512xf32>
      %62 = vector.extract_strided_slice %61 {offsets = [0, 0], sizes = [8, 128], strides = [1, 1]} : vector<8x512xf32> to vector<8x128xf32>
      %cst_25 = arith.constant 5.000000e-01 : f32
      %63 = vector.broadcast %cst_25 : f32 to vector<8x128xf32>
      %64 = arith.mulf %63, %62 : vector<8x128xf32>
      %65 = math.tanh %64 : vector<8x128xf32>
      %cst_26 = arith.constant 1.000000e+00 : f32
      %66 = vector.broadcast %cst_26 : f32 to vector<8x128xf32>
      %67 = arith.addf %65, %66 : vector<8x128xf32>
      %cst_27 = arith.constant 5.000000e-01 : f32
      %68 = vector.broadcast %cst_27 : f32 to vector<8x128xf32>
      %69 = arith.mulf %68, %67 : vector<8x128xf32>
      %70 = vector.extract_strided_slice %61 {offsets = [0, 128], sizes = [8, 128], strides = [1, 1]} : vector<8x512xf32> to vector<8x128xf32>
      %cst_28 = arith.constant 5.000000e-01 : f32
      %71 = vector.broadcast %cst_28 : f32 to vector<8x128xf32>
      %72 = arith.mulf %71, %70 : vector<8x128xf32>
      %73 = math.tanh %72 : vector<8x128xf32>
      %cst_29 = arith.constant 1.000000e+00 : f32
      %74 = vector.broadcast %cst_29 : f32 to vector<8x128xf32>
      %75 = arith.addf %73, %74 : vector<8x128xf32>
      %cst_30 = arith.constant 5.000000e-01 : f32
      %76 = vector.broadcast %cst_30 : f32 to vector<8x128xf32>
      %77 = arith.mulf %76, %75 : vector<8x128xf32>
      %78 = vector.extract_strided_slice %61 {offsets = [0, 256], sizes = [8, 128], strides = [1, 1]} : vector<8x512xf32> to vector<8x128xf32>
      %79 = math.tanh %78 : vector<8x128xf32>
      %80 = vector.extract_strided_slice %61 {offsets = [0, 384], sizes = [8, 128], strides = [1, 1]} : vector<8x512xf32> to vector<8x128xf32>
      %cst_31 = arith.constant 5.000000e-01 : f32
      %81 = vector.broadcast %cst_31 : f32 to vector<8x128xf32>
      %82 = arith.mulf %81, %80 : vector<8x128xf32>
      %83 = math.tanh %82 : vector<8x128xf32>
      %cst_32 = arith.constant 1.000000e+00 : f32
      %84 = vector.broadcast %cst_32 : f32 to vector<8x128xf32>
      %85 = arith.addf %83, %84 : vector<8x128xf32>
      %cst_33 = arith.constant 5.000000e-01 : f32
      %86 = vector.broadcast %cst_33 : f32 to vector<8x128xf32>
      %87 = arith.mulf %86, %85 : vector<8x128xf32>
      %88 = arith.mulf %77, %56 : vector<8x128xf32>
      %89 = arith.mulf %69, %79 : vector<8x128xf32>
      %90 = arith.addf %88, %89 : vector<8x128xf32>
      %91 = math.tanh %90 : vector<8x128xf32>
      %92 = arith.mulf %87, %91 : vector<8x128xf32>
      %93 = arith.addi %9, %c1_i32 : i32
      %94 = vector.broadcast %93 : i32 to vector<8x1xi32>
      %95 = arith.cmpi slt, %94, %7 : vector<8x1xi32>
      %96 = vector.shape_cast %95 : vector<8x1xi1> to vector<8x1xi1>
      %97 = vector.broadcast %96 : vector<8x1xi1> to vector<8x128xi1>
      %98 = arith.select %97, %92, %53 : vector<8x128xi1>, vector<8x128xf32>
      %99 = vector.shape_cast %95 : vector<8x1xi1> to vector<8x1xi1>
      %100 = vector.broadcast %99 : vector<8x1xi1> to vector<8x128xi1>
      %101 = arith.select %100, %90, %56 : vector<8x128xi1>, vector<8x128xf32>
      %c2_i32 = arith.constant 2 : i32
      %102 = arith.index_cast %c2_i32 : i32 to index
      %c0_34 = arith.constant 0 : index
      %c0_35 = arith.constant 0 : index
      %103 = vector.load %arg4[%102, %c0_34, %c0_35] : memref<8x8x512xf32, #tpu.memory_space<vmem>>, vector<1x8x512xf32>
      %104 = vector.shape_cast %103 : vector<1x8x512xf32> to vector<8x512xf32>
      %cst_36 = arith.constant dense<0.000000e+00> : vector<8x512xf32>
      %105 = tpu.matmul %98, %8, %cst_36 {dimension_numbers = #tpu.dot_dimension_numbers<[1], [0], [0], [1], [0, 0, 1, 1], [], []>} : vector<8x128xf32>, vector<128x512xf32>, vector<8x512xf32> -> vector<8x512xf32>
      %106 = arith.addf %104, %105 : vector<8x512xf32>
      %107 = vector.extract_strided_slice %106 {offsets = [0, 0], sizes = [8, 128], strides = [1, 1]} : vector<8x512xf32> to vector<8x128xf32>
      %cst_37 = arith.constant 5.000000e-01 : f32
      %108 = vector.broadcast %cst_37 : f32 to vector<8x128xf32>
      %109 = arith.mulf %108, %107 : vector<8x128xf32>
      %110 = math.tanh %109 : vector<8x128xf32>
      %cst_38 = arith.constant 1.000000e+00 : f32
      %111 = vector.broadcast %cst_38 : f32 to vector<8x128xf32>
      %112 = arith.addf %110, %111 : vector<8x128xf32>
      %cst_39 = arith.constant 5.000000e-01 : f32
      %113 = vector.broadcast %cst_39 : f32 to vector<8x128xf32>
      %114 = arith.mulf %113, %112 : vector<8x128xf32>
      %115 = vector.extract_strided_slice %106 {offsets = [0, 128], sizes = [8, 128], strides = [1, 1]} : vector<8x512xf32> to vector<8x128xf32>
      %cst_40 = arith.constant 5.000000e-01 : f32
      %116 = vector.broadcast %cst_40 : f32 to vector<8x128xf32>
      %117 = arith.mulf %116, %115 : vector<8x128xf32>
      %118 = math.tanh %117 : vector<8x128xf32>
      %cst_41 = arith.constant 1.000000e+00 : f32
      %119 = vector.broadcast %cst_41 : f32 to vector<8x128xf32>
      %120 = arith.addf %118, %119 : vector<8x128xf32>
      %cst_42 = arith.constant 5.000000e-01 : f32
      %121 = vector.broadcast %cst_42 : f32 to vector<8x128xf32>
      %122 = arith.mulf %121, %120 : vector<8x128xf32>
      %123 = vector.extract_strided_slice %106 {offsets = [0, 256], sizes = [8, 128], strides = [1, 1]} : vector<8x512xf32> to vector<8x128xf32>
      %124 = math.tanh %123 : vector<8x128xf32>
      %125 = vector.extract_strided_slice %106 {offsets = [0, 384], sizes = [8, 128], strides = [1, 1]} : vector<8x512xf32> to vector<8x128xf32>
      %cst_43 = arith.constant 5.000000e-01 : f32
      %126 = vector.broadcast %cst_43 : f32 to vector<8x128xf32>
      %127 = arith.mulf %126, %125 : vector<8x128xf32>
      %128 = math.tanh %127 : vector<8x128xf32>
      %cst_44 = arith.constant 1.000000e+00 : f32
      %129 = vector.broadcast %cst_44 : f32 to vector<8x128xf32>
      %130 = arith.addf %128, %129 : vector<8x128xf32>
      %cst_45 = arith.constant 5.000000e-01 : f32
      %131 = vector.broadcast %cst_45 : f32 to vector<8x128xf32>
      %132 = arith.mulf %131, %130 : vector<8x128xf32>
      %133 = arith.mulf %122, %101 : vector<8x128xf32>
      %134 = arith.mulf %114, %124 : vector<8x128xf32>
      %135 = arith.addf %133, %134 : vector<8x128xf32>
      %136 = math.tanh %135 : vector<8x128xf32>
      %137 = arith.mulf %132, %136 : vector<8x128xf32>
      %138 = arith.addi %9, %c2_i32 : i32
      %139 = vector.broadcast %138 : i32 to vector<8x1xi32>
      %140 = arith.cmpi slt, %139, %7 : vector<8x1xi32>
      %141 = vector.shape_cast %140 : vector<8x1xi1> to vector<8x1xi1>
      %142 = vector.broadcast %141 : vector<8x1xi1> to vector<8x128xi1>
      %143 = arith.select %142, %137, %98 : vector<8x128xi1>, vector<8x128xf32>
      %144 = vector.shape_cast %140 : vector<8x1xi1> to vector<8x1xi1>
      %145 = vector.broadcast %144 : vector<8x1xi1> to vector<8x128xi1>
      %146 = arith.select %145, %135, %101 : vector<8x128xi1>, vector<8x128xf32>
      %c3_i32 = arith.constant 3 : i32
      %147 = arith.index_cast %c3_i32 : i32 to index
      %c0_46 = arith.constant 0 : index
      %c0_47 = arith.constant 0 : index
      %148 = vector.load %arg4[%147, %c0_46, %c0_47] : memref<8x8x512xf32, #tpu.memory_space<vmem>>, vector<1x8x512xf32>
      %149 = vector.shape_cast %148 : vector<1x8x512xf32> to vector<8x512xf32>
      %cst_48 = arith.constant dense<0.000000e+00> : vector<8x512xf32>
      %150 = tpu.matmul %143, %8, %cst_48 {dimension_numbers = #tpu.dot_dimension_numbers<[1], [0], [0], [1], [0, 0, 1, 1], [], []>} : vector<8x128xf32>, vector<128x512xf32>, vector<8x512xf32> -> vector<8x512xf32>
      %151 = arith.addf %149, %150 : vector<8x512xf32>
      %152 = vector.extract_strided_slice %151 {offsets = [0, 0], sizes = [8, 128], strides = [1, 1]} : vector<8x512xf32> to vector<8x128xf32>
      %cst_49 = arith.constant 5.000000e-01 : f32
      %153 = vector.broadcast %cst_49 : f32 to vector<8x128xf32>
      %154 = arith.mulf %153, %152 : vector<8x128xf32>
      %155 = math.tanh %154 : vector<8x128xf32>
      %cst_50 = arith.constant 1.000000e+00 : f32
      %156 = vector.broadcast %cst_50 : f32 to vector<8x128xf32>
      %157 = arith.addf %155, %156 : vector<8x128xf32>
      %cst_51 = arith.constant 5.000000e-01 : f32
      %158 = vector.broadcast %cst_51 : f32 to vector<8x128xf32>
      %159 = arith.mulf %158, %157 : vector<8x128xf32>
      %160 = vector.extract_strided_slice %151 {offsets = [0, 128], sizes = [8, 128], strides = [1, 1]} : vector<8x512xf32> to vector<8x128xf32>
      %cst_52 = arith.constant 5.000000e-01 : f32
      %161 = vector.broadcast %cst_52 : f32 to vector<8x128xf32>
      %162 = arith.mulf %161, %160 : vector<8x128xf32>
      %163 = math.tanh %162 : vector<8x128xf32>
      %cst_53 = arith.constant 1.000000e+00 : f32
      %164 = vector.broadcast %cst_53 : f32 to vector<8x128xf32>
      %165 = arith.addf %163, %164 : vector<8x128xf32>
      %cst_54 = arith.constant 5.000000e-01 : f32
      %166 = vector.broadcast %cst_54 : f32 to vector<8x128xf32>
      %167 = arith.mulf %166, %165 : vector<8x128xf32>
      %168 = vector.extract_strided_slice %151 {offsets = [0, 256], sizes = [8, 128], strides = [1, 1]} : vector<8x512xf32> to vector<8x128xf32>
      %169 = math.tanh %168 : vector<8x128xf32>
      %170 = vector.extract_strided_slice %151 {offsets = [0, 384], sizes = [8, 128], strides = [1, 1]} : vector<8x512xf32> to vector<8x128xf32>
      %cst_55 = arith.constant 5.000000e-01 : f32
      %171 = vector.broadcast %cst_55 : f32 to vector<8x128xf32>
      %172 = arith.mulf %171, %170 : vector<8x128xf32>
      %173 = math.tanh %172 : vector<8x128xf32>
      %cst_56 = arith.constant 1.000000e+00 : f32
      %174 = vector.broadcast %cst_56 : f32 to vector<8x128xf32>
      %175 = arith.addf %173, %174 : vector<8x128xf32>
      %cst_57 = arith.constant 5.000000e-01 : f32
      %176 = vector.broadcast %cst_57 : f32 to vector<8x128xf32>
      %177 = arith.mulf %176, %175 : vector<8x128xf32>
      %178 = arith.mulf %167, %146 : vector<8x128xf32>
      %179 = arith.mulf %159, %169 : vector<8x128xf32>
      %180 = arith.addf %178, %179 : vector<8x128xf32>
      %181 = math.tanh %180 : vector<8x128xf32>
      %182 = arith.mulf %177, %181 : vector<8x128xf32>
      %183 = arith.addi %9, %c3_i32 : i32
      %184 = vector.broadcast %183 : i32 to vector<8x1xi32>
      %185 = arith.cmpi slt, %184, %7 : vector<8x1xi32>
      %186 = vector.shape_cast %185 : vector<8x1xi1> to vector<8x1xi1>
      %187 = vector.broadcast %186 : vector<8x1xi1> to vector<8x128xi1>
      %188 = arith.select %187, %182, %143 : vector<8x128xi1>, vector<8x128xf32>
      %189 = vector.shape_cast %185 : vector<8x1xi1> to vector<8x1xi1>
      %190 = vector.broadcast %189 : vector<8x1xi1> to vector<8x128xi1>
      %191 = arith.select %190, %180, %146 : vector<8x128xi1>, vector<8x128xf32>
      %c4_i32 = arith.constant 4 : i32
      %192 = arith.index_cast %c4_i32 : i32 to index
      %c0_58 = arith.constant 0 : index
      %c0_59 = arith.constant 0 : index
      %193 = vector.load %arg4[%192, %c0_58, %c0_59] : memref<8x8x512xf32, #tpu.memory_space<vmem>>, vector<1x8x512xf32>
      %194 = vector.shape_cast %193 : vector<1x8x512xf32> to vector<8x512xf32>
      %cst_60 = arith.constant dense<0.000000e+00> : vector<8x512xf32>
      %195 = tpu.matmul %188, %8, %cst_60 {dimension_numbers = #tpu.dot_dimension_numbers<[1], [0], [0], [1], [0, 0, 1, 1], [], []>} : vector<8x128xf32>, vector<128x512xf32>, vector<8x512xf32> -> vector<8x512xf32>
      %196 = arith.addf %194, %195 : vector<8x512xf32>
      %197 = vector.extract_strided_slice %196 {offsets = [0, 0], sizes = [8, 128], strides = [1, 1]} : vector<8x512xf32> to vector<8x128xf32>
      %cst_61 = arith.constant 5.000000e-01 : f32
      %198 = vector.broadcast %cst_61 : f32 to vector<8x128xf32>
      %199 = arith.mulf %198, %197 : vector<8x128xf32>
      %200 = math.tanh %199 : vector<8x128xf32>
      %cst_62 = arith.constant 1.000000e+00 : f32
      %201 = vector.broadcast %cst_62 : f32 to vector<8x128xf32>
      %202 = arith.addf %200, %201 : vector<8x128xf32>
      %cst_63 = arith.constant 5.000000e-01 : f32
      %203 = vector.broadcast %cst_63 : f32 to vector<8x128xf32>
      %204 = arith.mulf %203, %202 : vector<8x128xf32>
      %205 = vector.extract_strided_slice %196 {offsets = [0, 128], sizes = [8, 128], strides = [1, 1]} : vector<8x512xf32> to vector<8x128xf32>
      %cst_64 = arith.constant 5.000000e-01 : f32
      %206 = vector.broadcast %cst_64 : f32 to vector<8x128xf32>
      %207 = arith.mulf %206, %205 : vector<8x128xf32>
      %208 = math.tanh %207 : vector<8x128xf32>
      %cst_65 = arith.constant 1.000000e+00 : f32
      %209 = vector.broadcast %cst_65 : f32 to vector<8x128xf32>
      %210 = arith.addf %208, %209 : vector<8x128xf32>
      %cst_66 = arith.constant 5.000000e-01 : f32
      %211 = vector.broadcast %cst_66 : f32 to vector<8x128xf32>
      %212 = arith.mulf %211, %210 : vector<8x128xf32>
      %213 = vector.extract_strided_slice %196 {offsets = [0, 256], sizes = [8, 128], strides = [1, 1]} : vector<8x512xf32> to vector<8x128xf32>
      %214 = math.tanh %213 : vector<8x128xf32>
      %215 = vector.extract_strided_slice %196 {offsets = [0, 384], sizes = [8, 128], strides = [1, 1]} : vector<8x512xf32> to vector<8x128xf32>
      %cst_67 = arith.constant 5.000000e-01 : f32
      %216 = vector.broadcast %cst_67 : f32 to vector<8x128xf32>
      %217 = arith.mulf %216, %215 : vector<8x128xf32>
      %218 = math.tanh %217 : vector<8x128xf32>
      %cst_68 = arith.constant 1.000000e+00 : f32
      %219 = vector.broadcast %cst_68 : f32 to vector<8x128xf32>
      %220 = arith.addf %218, %219 : vector<8x128xf32>
      %cst_69 = arith.constant 5.000000e-01 : f32
      %221 = vector.broadcast %cst_69 : f32 to vector<8x128xf32>
      %222 = arith.mulf %221, %220 : vector<8x128xf32>
      %223 = arith.mulf %212, %191 : vector<8x128xf32>
      %224 = arith.mulf %204, %214 : vector<8x128xf32>
      %225 = arith.addf %223, %224 : vector<8x128xf32>
      %226 = math.tanh %225 : vector<8x128xf32>
      %227 = arith.mulf %222, %226 : vector<8x128xf32>
      %228 = arith.addi %9, %c4_i32 : i32
      %229 = vector.broadcast %228 : i32 to vector<8x1xi32>
      %230 = arith.cmpi slt, %229, %7 : vector<8x1xi32>
      %231 = vector.shape_cast %230 : vector<8x1xi1> to vector<8x1xi1>
      %232 = vector.broadcast %231 : vector<8x1xi1> to vector<8x128xi1>
      %233 = arith.select %232, %227, %188 : vector<8x128xi1>, vector<8x128xf32>
      %234 = vector.shape_cast %230 : vector<8x1xi1> to vector<8x1xi1>
      %235 = vector.broadcast %234 : vector<8x1xi1> to vector<8x128xi1>
      %236 = arith.select %235, %225, %191 : vector<8x128xi1>, vector<8x128xf32>
      %c5_i32 = arith.constant 5 : i32
      %237 = arith.index_cast %c5_i32 : i32 to index
      %c0_70 = arith.constant 0 : index
      %c0_71 = arith.constant 0 : index
      %238 = vector.load %arg4[%237, %c0_70, %c0_71] : memref<8x8x512xf32, #tpu.memory_space<vmem>>, vector<1x8x512xf32>
      %239 = vector.shape_cast %238 : vector<1x8x512xf32> to vector<8x512xf32>
      %cst_72 = arith.constant dense<0.000000e+00> : vector<8x512xf32>
      %240 = tpu.matmul %233, %8, %cst_72 {dimension_numbers = #tpu.dot_dimension_numbers<[1], [0], [0], [1], [0, 0, 1, 1], [], []>} : vector<8x128xf32>, vector<128x512xf32>, vector<8x512xf32> -> vector<8x512xf32>
      %241 = arith.addf %239, %240 : vector<8x512xf32>
      %242 = vector.extract_strided_slice %241 {offsets = [0, 0], sizes = [8, 128], strides = [1, 1]} : vector<8x512xf32> to vector<8x128xf32>
      %cst_73 = arith.constant 5.000000e-01 : f32
      %243 = vector.broadcast %cst_73 : f32 to vector<8x128xf32>
      %244 = arith.mulf %243, %242 : vector<8x128xf32>
      %245 = math.tanh %244 : vector<8x128xf32>
      %cst_74 = arith.constant 1.000000e+00 : f32
      %246 = vector.broadcast %cst_74 : f32 to vector<8x128xf32>
      %247 = arith.addf %245, %246 : vector<8x128xf32>
      %cst_75 = arith.constant 5.000000e-01 : f32
      %248 = vector.broadcast %cst_75 : f32 to vector<8x128xf32>
      %249 = arith.mulf %248, %247 : vector<8x128xf32>
      %250 = vector.extract_strided_slice %241 {offsets = [0, 128], sizes = [8, 128], strides = [1, 1]} : vector<8x512xf32> to vector<8x128xf32>
      %cst_76 = arith.constant 5.000000e-01 : f32
      %251 = vector.broadcast %cst_76 : f32 to vector<8x128xf32>
      %252 = arith.mulf %251, %250 : vector<8x128xf32>
      %253 = math.tanh %252 : vector<8x128xf32>
      %cst_77 = arith.constant 1.000000e+00 : f32
      %254 = vector.broadcast %cst_77 : f32 to vector<8x128xf32>
      %255 = arith.addf %253, %254 : vector<8x128xf32>
      %cst_78 = arith.constant 5.000000e-01 : f32
      %256 = vector.broadcast %cst_78 : f32 to vector<8x128xf32>
      %257 = arith.mulf %256, %255 : vector<8x128xf32>
      %258 = vector.extract_strided_slice %241 {offsets = [0, 256], sizes = [8, 128], strides = [1, 1]} : vector<8x512xf32> to vector<8x128xf32>
      %259 = math.tanh %258 : vector<8x128xf32>
      %260 = vector.extract_strided_slice %241 {offsets = [0, 384], sizes = [8, 128], strides = [1, 1]} : vector<8x512xf32> to vector<8x128xf32>
      %cst_79 = arith.constant 5.000000e-01 : f32
      %261 = vector.broadcast %cst_79 : f32 to vector<8x128xf32>
      %262 = arith.mulf %261, %260 : vector<8x128xf32>
      %263 = math.tanh %262 : vector<8x128xf32>
      %cst_80 = arith.constant 1.000000e+00 : f32
      %264 = vector.broadcast %cst_80 : f32 to vector<8x128xf32>
      %265 = arith.addf %263, %264 : vector<8x128xf32>
      %cst_81 = arith.constant 5.000000e-01 : f32
      %266 = vector.broadcast %cst_81 : f32 to vector<8x128xf32>
      %267 = arith.mulf %266, %265 : vector<8x128xf32>
      %268 = arith.mulf %257, %236 : vector<8x128xf32>
      %269 = arith.mulf %249, %259 : vector<8x128xf32>
      %270 = arith.addf %268, %269 : vector<8x128xf32>
      %271 = math.tanh %270 : vector<8x128xf32>
      %272 = arith.mulf %267, %271 : vector<8x128xf32>
      %273 = arith.addi %9, %c5_i32 : i32
      %274 = vector.broadcast %273 : i32 to vector<8x1xi32>
      %275 = arith.cmpi slt, %274, %7 : vector<8x1xi32>
      %276 = vector.shape_cast %275 : vector<8x1xi1> to vector<8x1xi1>
      %277 = vector.broadcast %276 : vector<8x1xi1> to vector<8x128xi1>
      %278 = arith.select %277, %272, %233 : vector<8x128xi1>, vector<8x128xf32>
      %279 = vector.shape_cast %275 : vector<8x1xi1> to vector<8x1xi1>
      %280 = vector.broadcast %279 : vector<8x1xi1> to vector<8x128xi1>
      %281 = arith.select %280, %270, %236 : vector<8x128xi1>, vector<8x128xf32>
      %c6_i32 = arith.constant 6 : i32
      %282 = arith.index_cast %c6_i32 : i32 to index
      %c0_82 = arith.constant 0 : index
      %c0_83 = arith.constant 0 : index
      %283 = vector.load %arg4[%282, %c0_82, %c0_83] : memref<8x8x512xf32, #tpu.memory_space<vmem>>, vector<1x8x512xf32>
      %284 = vector.shape_cast %283 : vector<1x8x512xf32> to vector<8x512xf32>
      %cst_84 = arith.constant dense<0.000000e+00> : vector<8x512xf32>
      %285 = tpu.matmul %278, %8, %cst_84 {dimension_numbers = #tpu.dot_dimension_numbers<[1], [0], [0], [1], [0, 0, 1, 1], [], []>} : vector<8x128xf32>, vector<128x512xf32>, vector<8x512xf32> -> vector<8x512xf32>
      %286 = arith.addf %284, %285 : vector<8x512xf32>
      %287 = vector.extract_strided_slice %286 {offsets = [0, 0], sizes = [8, 128], strides = [1, 1]} : vector<8x512xf32> to vector<8x128xf32>
      %cst_85 = arith.constant 5.000000e-01 : f32
      %288 = vector.broadcast %cst_85 : f32 to vector<8x128xf32>
      %289 = arith.mulf %288, %287 : vector<8x128xf32>
      %290 = math.tanh %289 : vector<8x128xf32>
      %cst_86 = arith.constant 1.000000e+00 : f32
      %291 = vector.broadcast %cst_86 : f32 to vector<8x128xf32>
      %292 = arith.addf %290, %291 : vector<8x128xf32>
      %cst_87 = arith.constant 5.000000e-01 : f32
      %293 = vector.broadcast %cst_87 : f32 to vector<8x128xf32>
      %294 = arith.mulf %293, %292 : vector<8x128xf32>
      %295 = vector.extract_strided_slice %286 {offsets = [0, 128], sizes = [8, 128], strides = [1, 1]} : vector<8x512xf32> to vector<8x128xf32>
      %cst_88 = arith.constant 5.000000e-01 : f32
      %296 = vector.broadcast %cst_88 : f32 to vector<8x128xf32>
      %297 = arith.mulf %296, %295 : vector<8x128xf32>
      %298 = math.tanh %297 : vector<8x128xf32>
      %cst_89 = arith.constant 1.000000e+00 : f32
      %299 = vector.broadcast %cst_89 : f32 to vector<8x128xf32>
      %300 = arith.addf %298, %299 : vector<8x128xf32>
      %cst_90 = arith.constant 5.000000e-01 : f32
      %301 = vector.broadcast %cst_90 : f32 to vector<8x128xf32>
      %302 = arith.mulf %301, %300 : vector<8x128xf32>
      %303 = vector.extract_strided_slice %286 {offsets = [0, 256], sizes = [8, 128], strides = [1, 1]} : vector<8x512xf32> to vector<8x128xf32>
      %304 = math.tanh %303 : vector<8x128xf32>
      %305 = vector.extract_strided_slice %286 {offsets = [0, 384], sizes = [8, 128], strides = [1, 1]} : vector<8x512xf32> to vector<8x128xf32>
      %cst_91 = arith.constant 5.000000e-01 : f32
      %306 = vector.broadcast %cst_91 : f32 to vector<8x128xf32>
      %307 = arith.mulf %306, %305 : vector<8x128xf32>
      %308 = math.tanh %307 : vector<8x128xf32>
      %cst_92 = arith.constant 1.000000e+00 : f32
      %309 = vector.broadcast %cst_92 : f32 to vector<8x128xf32>
      %310 = arith.addf %308, %309 : vector<8x128xf32>
      %cst_93 = arith.constant 5.000000e-01 : f32
      %311 = vector.broadcast %cst_93 : f32 to vector<8x128xf32>
      %312 = arith.mulf %311, %310 : vector<8x128xf32>
      %313 = arith.mulf %302, %281 : vector<8x128xf32>
      %314 = arith.mulf %294, %304 : vector<8x128xf32>
      %315 = arith.addf %313, %314 : vector<8x128xf32>
      %316 = math.tanh %315 : vector<8x128xf32>
      %317 = arith.mulf %312, %316 : vector<8x128xf32>
      %318 = arith.addi %9, %c6_i32 : i32
      %319 = vector.broadcast %318 : i32 to vector<8x1xi32>
      %320 = arith.cmpi slt, %319, %7 : vector<8x1xi32>
      %321 = vector.shape_cast %320 : vector<8x1xi1> to vector<8x1xi1>
      %322 = vector.broadcast %321 : vector<8x1xi1> to vector<8x128xi1>
      %323 = arith.select %322, %317, %278 : vector<8x128xi1>, vector<8x128xf32>
      %324 = vector.shape_cast %320 : vector<8x1xi1> to vector<8x1xi1>
      %325 = vector.broadcast %324 : vector<8x1xi1> to vector<8x128xi1>
      %326 = arith.select %325, %315, %281 : vector<8x128xi1>, vector<8x128xf32>
      %c7_i32 = arith.constant 7 : i32
      %327 = arith.index_cast %c7_i32 : i32 to index
      %c0_94 = arith.constant 0 : index
      %c0_95 = arith.constant 0 : index
      %328 = vector.load %arg4[%327, %c0_94, %c0_95] : memref<8x8x512xf32, #tpu.memory_space<vmem>>, vector<1x8x512xf32>
      %329 = vector.shape_cast %328 : vector<1x8x512xf32> to vector<8x512xf32>
      %cst_96 = arith.constant dense<0.000000e+00> : vector<8x512xf32>
      %330 = tpu.matmul %323, %8, %cst_96 {dimension_numbers = #tpu.dot_dimension_numbers<[1], [0], [0], [1], [0, 0, 1, 1], [], []>} : vector<8x128xf32>, vector<128x512xf32>, vector<8x512xf32> -> vector<8x512xf32>
      %331 = arith.addf %329, %330 : vector<8x512xf32>
      %332 = vector.extract_strided_slice %331 {offsets = [0, 0], sizes = [8, 128], strides = [1, 1]} : vector<8x512xf32> to vector<8x128xf32>
      %cst_97 = arith.constant 5.000000e-01 : f32
      %333 = vector.broadcast %cst_97 : f32 to vector<8x128xf32>
      %334 = arith.mulf %333, %332 : vector<8x128xf32>
      %335 = math.tanh %334 : vector<8x128xf32>
      %cst_98 = arith.constant 1.000000e+00 : f32
      %336 = vector.broadcast %cst_98 : f32 to vector<8x128xf32>
      %337 = arith.addf %335, %336 : vector<8x128xf32>
      %cst_99 = arith.constant 5.000000e-01 : f32
      %338 = vector.broadcast %cst_99 : f32 to vector<8x128xf32>
      %339 = arith.mulf %338, %337 : vector<8x128xf32>
      %340 = vector.extract_strided_slice %331 {offsets = [0, 128], sizes = [8, 128], strides = [1, 1]} : vector<8x512xf32> to vector<8x128xf32>
      %cst_100 = arith.constant 5.000000e-01 : f32
      %341 = vector.broadcast %cst_100 : f32 to vector<8x128xf32>
      %342 = arith.mulf %341, %340 : vector<8x128xf32>
      %343 = math.tanh %342 : vector<8x128xf32>
      %cst_101 = arith.constant 1.000000e+00 : f32
      %344 = vector.broadcast %cst_101 : f32 to vector<8x128xf32>
      %345 = arith.addf %343, %344 : vector<8x128xf32>
      %cst_102 = arith.constant 5.000000e-01 : f32
      %346 = vector.broadcast %cst_102 : f32 to vector<8x128xf32>
      %347 = arith.mulf %346, %345 : vector<8x128xf32>
      %348 = vector.extract_strided_slice %331 {offsets = [0, 256], sizes = [8, 128], strides = [1, 1]} : vector<8x512xf32> to vector<8x128xf32>
      %349 = math.tanh %348 : vector<8x128xf32>
      %350 = vector.extract_strided_slice %331 {offsets = [0, 384], sizes = [8, 128], strides = [1, 1]} : vector<8x512xf32> to vector<8x128xf32>
      %cst_103 = arith.constant 5.000000e-01 : f32
      %351 = vector.broadcast %cst_103 : f32 to vector<8x128xf32>
      %352 = arith.mulf %351, %350 : vector<8x128xf32>
      %353 = math.tanh %352 : vector<8x128xf32>
      %cst_104 = arith.constant 1.000000e+00 : f32
      %354 = vector.broadcast %cst_104 : f32 to vector<8x128xf32>
      %355 = arith.addf %353, %354 : vector<8x128xf32>
      %cst_105 = arith.constant 5.000000e-01 : f32
      %356 = vector.broadcast %cst_105 : f32 to vector<8x128xf32>
      %357 = arith.mulf %356, %355 : vector<8x128xf32>
      %358 = arith.mulf %347, %326 : vector<8x128xf32>
      %359 = arith.mulf %339, %349 : vector<8x128xf32>
      %360 = arith.addf %358, %359 : vector<8x128xf32>
      %361 = math.tanh %360 : vector<8x128xf32>
      %362 = arith.mulf %357, %361 : vector<8x128xf32>
      %363 = arith.addi %9, %c7_i32 : i32
      %364 = vector.broadcast %363 : i32 to vector<8x1xi32>
      %365 = arith.cmpi slt, %364, %7 : vector<8x1xi32>
      %366 = vector.shape_cast %365 : vector<8x1xi1> to vector<8x1xi1>
      %367 = vector.broadcast %366 : vector<8x1xi1> to vector<8x128xi1>
      %368 = arith.select %367, %362, %323 : vector<8x128xi1>, vector<8x128xf32>
      %369 = vector.shape_cast %365 : vector<8x1xi1> to vector<8x1xi1>
      %370 = vector.broadcast %369 : vector<8x1xi1> to vector<8x128xi1>
      %371 = arith.select %370, %360, %326 : vector<8x128xi1>, vector<8x128xf32>
      %c8_i32_106 = arith.constant 8 : i32
      %c0_107 = arith.constant 0 : index
      %c0_108 = arith.constant 0 : index
      %372 = vector.load %arg7[%c0_107, %c0_108] : memref<8x128xf32, #tpu.memory_space<vmem>>, vector<8x128xf32>
      tpu.vector_store %arg7[%c0_107, %c0_108], %368 {strides = array<i32>} : memref<8x128xf32, #tpu.memory_space<vmem>>, vector<8x128xf32>,
      %c0_109 = arith.constant 0 : index
      %c0_110 = arith.constant 0 : index
      %373 = vector.load %arg8[%c0_109, %c0_110] : memref<8x128xf32, #tpu.memory_space<vmem>>, vector<8x128xf32>
      tpu.vector_store %arg8[%c0_109, %c0_110], %371 {strides = array<i32>} : memref<8x128xf32, #tpu.memory_space<vmem>>, vector<8x128xf32>,
      %c0_111 = arith.constant 0 : index
      %c0_112 = arith.constant 0 : index
      %374 = vector.load %arg6[%c0_111, %c0_112] : memref<8x128xf32, #tpu.memory_space<vmem>>, vector<8x128xf32>
      tpu.vector_store %arg6[%c0_111, %c0_112], %368 {strides = array<i32>} : memref<8x128xf32, #tpu.memory_space<vmem>>, vector<8x128xf32>,
    } else {
    }
    return
  }
  func.func @transform_0(%arg0: i32, %arg1: i32, %arg2: memref<1xi32, #tpu.memory_space<smem>>) -> (i32, i32) {
    %c0_i32 = arith.constant 0 : i32
    %c0_i32_0 = arith.constant 0 : i32
    return %arg0, %c0_i32 : i32, i32
  }
  func.func @transform_1(%arg0: i32, %arg1: i32, %arg2: memref<1xi32, #tpu.memory_space<smem>>) -> (i32, i32, i32) {
    %c0 = arith.constant 0 : index
    %0 = memref.load %arg2[%c0] : memref<1xi32, #tpu.memory_space<smem>>
    %c1_i32 = arith.constant 1 : i32
    %1 = arith.subi %0, %c1_i32 : i32
    %2 = arith.minsi %arg1, %1 : i32
    %c0_i32 = arith.constant 0 : i32
    %c0_i32_0 = arith.constant 0 : i32
    return %2, %arg0, %c0_i32 : i32, i32, i32
  }
  func.func @transform_2(%arg0: i32, %arg1: i32, %arg2: memref<1xi32, #tpu.memory_space<smem>>) -> (i32, i32) {
    %c0_i32 = arith.constant 0 : i32
    %c0_i32_0 = arith.constant 0 : i32
    %c0_i32_1 = arith.constant 0 : i32
    return %c0_i32, %c0_i32_0 : i32, i32
  }
  func.func @transform_3(%arg0: i32, %arg1: i32, %arg2: memref<1xi32, #tpu.memory_space<smem>>) -> (i32, i32) {
    %c0_i32 = arith.constant 0 : i32
    %c0_i32_0 = arith.constant 0 : i32
    return %arg0, %c0_i32 : i32, i32
  }
}

</mosaic_0001>

<llo_original>
// kernel: tpu_custom_call.1
$region0: #{tpu_custom_call.1}
  #allocation0 [shape = 'u32[]', space=smem, size = 0x4, offset = 0x4, fixed_abs, tag = 'smem constant byte address 0x4 - core index']
  #allocation1 [shape = 'u32[144,128]{1,0:T(1,128)}', space=vmem, size = 0x12000, scoped, tag = 'internal scratch']
  #allocation2 [shape = 'f32[8,128]{1,0:T(8,128)}', space=vmem, size = 0x1000, scoped, tag = 'scratch operand']
  #allocation3 [shape = 'f32[8,128]{1,0:T(8,128)}', space=vmem, size = 0x1000, scoped, tag = 'scratch operand']
  #allocation4 [shape = 's32[1]{0}', space=sflag, size = 0x4, scoped, tag = 'scoped memory for tpu_custom_call.1']
  #allocation5 [shape = 's32[1]{0:T(128)S(6)}', space=smem, size = 0x200, scoped, tag = 'prefetched SMEM operand 0']
  %s0 = inlined_call_operand.<no memory space> [shape: s32[1], index: 0, kind: input, shape index: {}]
  %s1 = inlined_call_operand.vmem [shape: s32[8,1], index: 1, kind: input, shape index: {}]
  %s2 = inlined_call_operand.hbm [shape: f32[8,8,512], index: 2, kind: input, shape index: {}]
  %s3 = inlined_call_operand.hbm [shape: f32[128,512], index: 3, kind: input, shape index: {}]
  %s4 = inlined_call_operand.hbm [shape: f32[8,128], index: 4, kind: output, shape index: {}]
  %s5 = sld [smem:[#allocation0]]
  $region38: #{tpu_custom_call.1} parent=0
    _
  %s7 = ssub.s32 1, %s5
  %s8 = scalar_select 0, %s7, %s5
  %9 = sst [smem:[#allocation5]] %s0
  $region1: #{tpu_custom_call.1} parent=0
    #allocation6 [shape = 'u8[131072]{0}', space=vmem, size = 0x20000, scoped, tag = 'input window, operand 2, single buffered']
    #allocation7 [shape = 's32[1]{0}', space=sflag, size = 0x4, scoped, tag = 'scoped memory for tpu_custom_call.1']
    #allocation8 [shape = 's32[1]{0}', space=sflag, size = 0x4, scoped, tag = 'scoped memory for tpu_custom_call.1']
    #allocation9 [shape = 'u8[262144]{0}', space=vmem, size = 0x40000, scoped, tag = 'input window, operand 3, single buffered']
    #allocation10 [shape = 's32[1]{0}', space=sflag, size = 0x4, scoped, tag = 'scoped memory for tpu_custom_call.1']
    #allocation11 [shape = 'u8[4096]{0}', space=vmem, size = 0x1000, scoped, tag = 'output window, operand 0, single buffered']
    %10 = vsyncpa [#allocation7], 0
    %11 = vsyncpa [#allocation10], 0
    %12 = vsyncpa [#allocation8], 0
    // Predicated region
    $region2: #{tpu_custom_call.1} parent=1 // pred_check
      _
    $region3: #{tpu_custom_call.1} parent=1 // pred_check_branch
      %14 = sbr.rel (0) target = $region5
    $region4: #{tpu_custom_call.1} parent=1 // pred_region
      _
    $region5: #{tpu_custom_call.1} parent=1 // pred_fallthru
      _
    // Predicated region
    $region6: #{tpu_custom_call.1} parent=1 // pred_check
      _
    $region7: #{tpu_custom_call.1} parent=1 // pred_check_branch
      %16 = sbr.rel (0) target = $region9
    $region8: #{tpu_custom_call.1} parent=1 // pred_region
      %s17 = sld [smem:[#allocation5]]
      %s18 = ssub.s32 %s17, 1
      %p19 = scmp.lt.s32.totalorder 0, %s18
      %s20 = scalar_select %p19, 0, %s18
      %s21 = smul.u32 8, %s20
      %s23 = ssub.s32 4096, 4096
      %24 = vsyncadd [#allocation7], %s23
      %s25 = smul.addr %s21, 4
      %s26 = smul.addr %s25, 128
      %s27 = scalar_lea.hbm %s2, %s26
      %s28 = sshll.u32 [#allocation6], 4
      %s29 = int_to_ptr.vmem [resolvable:$true] %s28
      %34 = dma.hbm_to_vmem [thread:$0]  %s27, 4096, %s29, [#allocation7], 512, 512, 32
    $region9: #{tpu_custom_call.1} parent=1 // pred_fallthru
      _
    // Predicated region
    $region10: #{tpu_custom_call.1} parent=1 // pred_check
      _
    $region11: #{tpu_custom_call.1} parent=1 // pred_check_branch
      %36 = sbr.rel (0) target = $region13
    $region12: #{tpu_custom_call.1} parent=1 // pred_region
      %s38 = ssub.s32 8192, 8192
      %39 = vsyncadd [#allocation10], %s38
      %s40 = sshll.u32 [#allocation9], 4
      %s41 = int_to_ptr.vmem [resolvable:$true] %s40
      %46 = dma.hbm_to_vmem [thread:$0]  %s3, 8192, %s41, [#allocation10], 512, 512, 32
    $region13: #{tpu_custom_call.1} parent=1 // pred_fallthru
      _
    // Predicated region
    $region14: #{tpu_custom_call.1} parent=1 // pred_check
      _
    $region15: #{tpu_custom_call.1} parent=1 // pred_check_branch
      %48 = sbr.rel (0) target = $region17
    $region16: #{tpu_custom_call.1} parent=1 // pred_region
      %49 = dma.done [#allocation7], 4096
    $region17: #{tpu_custom_call.1} parent=1 // pred_fallthru
      _
    // Predicated region
    $region18: #{tpu_custom_call.1} parent=1 // pred_check
      _
    $region19: #{tpu_custom_call.1} parent=1 // pred_check_branch
      %51 = sbr.rel (0) target = $region21
    $region20: #{tpu_custom_call.1} parent=1 // pred_region
      %52 = dma.done [#allocation10], 8192
    $region21: #{tpu_custom_call.1} parent=1 // pred_fallthru
      _
    %s53 = sld [smem:[#allocation5]]
    %s54 = ssub.s32 %s53, 1
    %p55 = scmp.lt.s32.totalorder 0, %s54
    %s56 = scalar_select %p55, 0, %s54
    %s57 = smul.u32 8, %s56
    %p58 = scmp.eq.s32.totalorder 0, 0
    // Predicated region
    $region22: #{tpu_custom_call.1} parent=1 // pred_check
      %p59 = pneg %p58
    $region23: #{tpu_custom_call.1} parent=1 // pred_check_branch
      %61 = sbr.rel (%p59) target = $region25
    $region24: #{tpu_custom_call.1} parent=1 // pred_region
      %62 = vst [vmem:[#allocation2] sm:$0xff] 0.0
      %63 = vst [vmem:[#allocation3] sm:$0xff] 0.0
    $region25: #{tpu_custom_call.1} parent=1 // pred_fallthru
      _
    %s64 = sld [smem:[#allocation5]]
    %p65 = scmp.lt.s32.totalorder 0, %s64
    // Predicated region
    $region26: #{tpu_custom_call.1} parent=1 // pred_check
      %p66 = pneg %p65
    $region27: #{tpu_custom_call.1} parent=1 // pred_check_branch
      %68 = sbr.rel (%p66) target = $region29
    $region28: #{tpu_custom_call.1} parent=1 // pred_region
      %v69 = vld [vmem:[%s1] sm:$0xff]
      %v70 = vld [vmem:[#allocation9] sm:$0xff]
      %v71 = vld [vmem:[#allocation9 + $0x8] sm:$0xff]
      %v72 = vld [vmem:[#allocation9 + $0x10] sm:$0xff]
      %v73 = vld [vmem:[#allocation9 + $0x18] sm:$0xff]
      %v74 = vld [vmem:[#allocation9 + $0x20] sm:$0xff]
      %v75 = vld [vmem:[#allocation9 + $0x28] sm:$0xff]
      %v76 = vld [vmem:[#allocation9 + $0x30] sm:$0xff]
      %v77 = vld [vmem:[#allocation9 + $0x38] sm:$0xff]
      %v78 = vld [vmem:[#allocation9 + $0x40] sm:$0xff]
      %v79 = vld [vmem:[#allocation9 + $0x48] sm:$0xff]
      %v80 = vld [vmem:[#allocation9 + $0x50] sm:$0xff]
      %v81 = vld [vmem:[#allocation9 + $0x58] sm:$0xff]
      %v82 = vld [vmem:[#allocation9 + $0x60] sm:$0xff]
      %v83 = vld [vmem:[#allocation9 + $0x68] sm:$0xff]
      %v84 = vld [vmem:[#allocation9 + $0x70] sm:$0xff]
      %v85 = vld [vmem:[#allocation9 + $0x78] sm:$0xff]
      %v86 = vld [vmem:[#allocation9 + $0x80] sm:$0xff]
      %v87 = vld [vmem:[#allocation9 + $0x88] sm:$0xff]
      %v88 = vld [vmem:[#allocation9 + $0x90] sm:$0xff]
      %v89 = vld [vmem:[#allocation9 + $0x98] sm:$0xff]
      %v90 = vld [vmem:[#allocation9 + $0xa0] sm:$0xff]
      %v91 = vld [vmem:[#allocation9 + $0xa8] sm:$0xff]
      %v92 = vld [vmem:[#allocation9 + $0xb0] sm:$0xff]
      %v93 = vld [vmem:[#allocation9 + $0xb8] sm:$0xff]
      %v94 = vld [vmem:[#allocation9 + $0xc0] sm:$0xff]
      %v95 = vld [vmem:[#allocation9 + $0xc8] sm:$0xff]
      %v96 = vld [vmem:[#allocation9 + $0xd0] sm:$0xff]
      %v97 = vld [vmem:[#allocation9 + $0xd8] sm:$0xff]
      %v98 = vld [vmem:[#allocation9 + $0xe0] sm:$0xff]
      %v99 = vld [vmem:[#allocation9 + $0xe8] sm:$0xff]
      %v100 = vld [vmem:[#allocation9 + $0xf0] sm:$0xff]
      %v101 = vld [vmem:[#allocation9 + $0xf8] sm:$0xff]
      %v102 = vld [vmem:[#allocation9 + $0x100] sm:$0xff]
      %v103 = vld [vmem:[#allocation9 + $0x108] sm:$0xff]
      %v104 = vld [vmem:[#allocation9 + $0x110] sm:$0xff]
      %v105 = vld [vmem:[#allocation9 + $0x118] sm:$0xff]
      %v106 = vld [vmem:[#allocation9 + $0x120] sm:$0xff]
      %v107 = vld [vmem:[#allocation9 + $0x128] sm:$0xff]
      %v108 = vld [vmem:[#allocation9 + $0x130] sm:$0xff]
      %v109 = vld [vmem:[#allocation9 + $0x138] sm:$0xff]
      %v110 = vld [vmem:[#allocation9 + $0x140] sm:$0xff]
      %v111 = vld [vmem:[#allocation9 + $0x148] sm:$0xff]
      %v112 = vld [vmem:[#allocation9 + $0x150] sm:$0xff]
      %v113 = vld [vmem:[#allocation9 + $0x158] sm:$0xff]
      %v114 = vld [vmem:[#allocation9 + $0x160] sm:$0xff]
      %v115 = vld [vmem:[#allocation9 + $0x168] sm:$0xff]
      %v116 = vld [vmem:[#allocation9 + $0x170] sm:$0xff]
      %v117 = vld [vmem:[#allocation9 + $0x178] sm:$0xff]
      %v118 = vld [vmem:[#allocation9 + $0x180] sm:$0xff]
      %v119 = vld [vmem:[#allocation9 + $0x188] sm:$0xff]
      %v120 = vld [vmem:[#allocation9 + $0x190] sm:$0xff]
      %v121 = vld [vmem:[#allocation9 + $0x198] sm:$0xff]
      %v122 = vld [vmem:[#allocation9 + $0x1a0] sm:$0xff]
      %v123 = vld [vmem:[#allocation9 + $0x1a8] sm:$0xff]
      %v124 = vld [vmem:[#allocation9 + $0x1b0] sm:$0xff]
      %v125 = vld [vmem:[#allocation9 + $0x1b8] sm:$0xff]
      %v126 = vld [vmem:[#allocation9 + $0x1c0] sm:$0xff]
      %v127 = vld [vmem:[#allocation9 + $0x1c8] sm:$0xff]
      %v128 = vld [vmem:[#allocation9 + $0x1d0] sm:$0xff]
      %v129 = vld [vmem:[#allocation9 + $0x1d8] sm:$0xff]
      %v130 = vld [vmem:[#allocation9 + $0x1e0] sm:$0xff]
      %v131 = vld [vmem:[#allocation9 + $0x1e8] sm:$0xff]
      %v132 = vld [vmem:[#allocation9 + $0x1f0] sm:$0xff]
      %v133 = vld [vmem:[#allocation9 + $0x1f8] sm:$0xff]
      %s134 = smul.u32 0, 8
      %v135 = vld [vmem:[#allocation2] sm:$0xff]
      %v136 = vld [vmem:[#allocation3] sm:$0xff]
      %v137 = vld [vmem:[#allocation6] sm:$0xff]
      %v138 = vld [vmem:[#allocation6 + $0x8] sm:$0xff]
      %v139 = vld [vmem:[#allocation6 + $0x10] sm:$0xff]
      %v140 = vld [vmem:[#allocation6 + $0x18] sm:$0xff]
      %141 = vmatprep.subr.mxu0 %v131
      %142 = vmatpush1.msra.mxu0 %v130
      %143 = vmatprep.subr.mxu0 %v127
      %144 = vmatpush1.msra.mxu0 %v126
      %145 = vmatprep.subr.mxu0 %v123
      %146 = vmatpush1.msra.mxu0 %v122
      %147 = vmatprep.subr.mxu0 %v119
      %148 = vmatpush1.msra.mxu0 %v118
      %149 = vmatprep.subr.mxu0 %v115
      %150 = vmatpush1.msra.mxu0 %v114
      %151 = vmatprep.subr.mxu0 %v111
      %152 = vmatpush1.msra.mxu0 %v110
      %153 = vmatprep.subr.mxu0 %v107
      %154 = vmatpush1.msra.mxu0 %v106
      %155 = vmatprep.subr.mxu0 %v103
      %156 = vmatpush1.msra.mxu0 %v102
      %157 = vmatprep.subr.mxu0 %v99
      %158 = vmatpush1.msra.mxu0 %v98
      %159 = vmatprep.subr.mxu0 %v95
      %160 = vmatpush1.msra.mxu0 %v94
      %161 = vmatprep.subr.mxu0 %v91
      %162 = vmatpush1.msra.mxu0 %v90
      %163 = vmatprep.subr.mxu0 %v87
      %164 = vmatpush1.msra.mxu0 %v86
      %165 = vmatprep.subr.mxu0 %v83
      %166 = vmatpush1.msra.mxu0 %v82
      %167 = vmatprep.subr.mxu0 %v79
      %168 = vmatpush1.msra.mxu0 %v78
      %169 = vmatprep.subr.mxu0 %v75
      %170 = vmatpush1.msra.mxu0 %v74
      %171 = vmatprep.subr.mxu0 %v71
      %172 = vmatpush1.msra.mxu0 %v70
      %173 = vmatprep.subr.mxu0 0.0
      %174 = vmatpush2.msra.mxu0 0.0
      %175 = vmatprep.subr.mxu0 0.0
      %176 = vmatpush2.msra.mxu0 0.0
      %177 = vmatprep.subr.mxu0 0.0
      %178 = vmatpush2.msra.mxu0 0.0
      %179 = vmatprep.subr.mxu0 0.0
      %180 = vmatpush2.msra.mxu0 0.0
      %181 = vmatprep.subr.mxu0 0.0
      %182 = vmatpush2.msra.mxu0 0.0
      %183 = vmatprep.subr.mxu0 0.0
      %184 = vmatpush2.msra.mxu0 0.0
      %185 = vmatprep.subr.mxu0 0.0
      %186 = vmatpush2.msra.mxu0 0.0
      %187 = vmatprep.subr.mxu0 0.0
      %188 = vmatpush2.msra.mxu0 0.0
      %189 = vmatprep.subr.mxu0 0.0
      %190 = vmatpush2.msra.mxu0 0.0
      %191 = vmatprep.subr.mxu0 0.0
      %192 = vmatpush2.msra.mxu0 0.0
      %193 = vmatprep.subr.mxu0 0.0
      %194 = vmatpush2.msra.mxu0 0.0
      %195 = vmatprep.subr.mxu0 0.0
      %196 = vmatpush2.msra.mxu0 0.0
      %197 = vmatprep.subr.mxu0 0.0
      %198 = vmatpush2.msra.mxu0 0.0
      %199 = vmatprep.subr.mxu0 0.0
      %200 = vmatpush2.msra.mxu0 0.0
      %201 = vmatprep.subr.mxu0 0.0
      %202 = vmatpush2.msra.mxu0 0.0
      %203 = vmatprep.subr.mxu0 0.0
      %204 = vmatpush2.msra.mxu0 0.0
      %205 = vmatprep.mubr.f32.mxu0 0.0
      %206 = vmatmul.mubr.f32.gmra.mxu0 %v135
      %v207 = vpop.f32.mrf.mxu0
      %v208 = vadd.f32 0.0, %v207
      %v209 = vpop.f32.mrf.mxu0
      %v210 = vadd.f32 0.0, %v209
      %211 = vdwg.mxu0
      %212 = vmatprep.subr.mxu0 %v133
      %213 = vmatpush1.msra.mxu0 %v132
      %214 = vmatprep.subr.mxu0 %v129
      %215 = vmatpush1.msra.mxu0 %v128
      %216 = vmatprep.subr.mxu0 %v125
      %217 = vmatpush1.msra.mxu0 %v124
      %218 = vmatprep.subr.mxu0 %v121
      %219 = vmatpush1.msra.mxu0 %v120
      %220 = vmatprep.subr.mxu0 %v117
      %221 = vmatpush1.msra.mxu0 %v116
      %222 = vmatprep.subr.mxu0 %v113
      %223 = vmatpush1.msra.mxu0 %v112
      %224 = vmatprep.subr.mxu0 %v109
      %225 = vmatpush1.msra.mxu0 %v108
      %226 = vmatprep.subr.mxu0 %v105
      %227 = vmatpush1.msra.mxu0 %v104
      %228 = vmatprep.subr.mxu0 %v101
      %229 = vmatpush1.msra.mxu0 %v100
      %230 = vmatprep.subr.mxu0 %v97
      %231 = vmatpush1.msra.mxu0 %v96
      %232 = vmatprep.subr.mxu0 %v93
      %233 = vmatpush1.msra.mxu0 %v92
      %234 = vmatprep.subr.mxu0 %v89
      %235 = vmatpush1.msra.mxu0 %v88
      %236 = vmatprep.subr.mxu0 %v85
      %237 = vmatpush1.msra.mxu0 %v84
      %238 = vmatprep.subr.mxu0 %v81
      %239 = vmatpush1.msra.mxu0 %v80
      %240 = vmatprep.subr.mxu0 %v77
      %241 = vmatpush1.msra.mxu0 %v76
      %242 = vmatprep.subr.mxu0 %v73
      %243 = vmatpush1.msra.mxu0 %v72
      %244 = vmatprep.subr.mxu0 0.0
      %245 = vmatpush2.msra.mxu0 0.0
      %246 = vmatprep.subr.mxu0 0.0
      %247 = vmatpush2.msra.mxu0 0.0
      %248 = vmatprep.subr.mxu0 0.0
      %249 = vmatpush2.msra.mxu0 0.0
      %250 = vmatprep.subr.mxu0 0.0
      %251 = vmatpush2.msra.mxu0 0.0
      %252 = vmatprep.subr.mxu0 0.0
      %253 = vmatpush2.msra.mxu0 0.0
      %254 = vmatprep.subr.mxu0 0.0
      %255 = vmatpush2.msra.mxu0 0.0
      %256 = vmatprep.subr.mxu0 0.0
      %257 = vmatpush2.msra.mxu0 0.0
      %258 = vmatprep.subr.mxu0 0.0
      %259 = vmatpush2.msra.mxu0 0.0
      %260 = vmatprep.subr.mxu0 0.0
      %261 = vmatpush2.msra.mxu0 0.0
      %262 = vmatprep.subr.mxu0 0.0
      %263 = vmatpush2.msra.mxu0 0.0
      %264 = vmatprep.subr.mxu0 0.0
      %265 = vmatpush2.msra.mxu0 0.0
      %266 = vmatprep.subr.mxu0 0.0
      %267 = vmatpush2.msra.mxu0 0.0
      %268 = vmatprep.subr.mxu0 0.0
      %269 = vmatpush2.msra.mxu0 0.0
      %270 = vmatprep.subr.mxu0 0.0
      %271 = vmatpush2.msra.mxu0 0.0
      %272 = vmatprep.subr.mxu0 0.0
      %273 = vmatpush2.msra.mxu0 0.0
      %274 = vmatprep.subr.mxu0 0.0
      %275 = vmatpush2.msra.mxu0 0.0
      %276 = vmatprep.mubr.f32.mxu0 0.0
      %277 = vmatmul.mubr.f32.gmra.mxu0 %v135
      %v278 = vpop.f32.mrf.mxu0
      %v279 = vadd.f32 0.0, %v278
      %v280 = vpop.f32.mrf.mxu0
      %v281 = vadd.f32 0.0, %v280
      %282 = vdwg.mxu0
      %v283 = vadd.f32 %v137, %v208
      %v284 = vadd.f32 %v138, %v210
      %v285 = vadd.f32 %v139, %v279
      %v286 = vadd.f32 %v140, %v281
      %v287 = vmul.f32 %v283, 0.5
      %v288 = vtanh.pop %v287
      %v289 = vadd.f32 %v288, 1.0
      %v290 = vmul.f32 %v289, 0.5
      %v291 = vmul.f32 %v284, 0.5
      %v292 = vtanh.pop %v291
      %v293 = vadd.f32 %v292, 1.0
      %v294 = vmul.f32 %v293, 0.5
      %v295 = vtanh.pop %v285
      %v296 = vmul.f32 %v286, 0.5
      %v297 = vtanh.pop %v296
      %v298 = vadd.f32 %v297, 1.0
      %v299 = vmul.f32 %v298, 0.5
      %v300 = vmul.f32 %v294, %v136
      %v301 = vmul.f32 %v290, %v295
      %v302 = vadd.f32 %v300, %v301
      %v303 = vtanh.pop %v302
      %v304 = vmul.f32 %v299, %v303
      %v305 = vstv %s134
      %vm306 = vcmp.lt.s32.totalorder %v305, %v69
      %v307 = vsel %vm306, 1, 0
      %308 = vset.pattern.permute.xlu0 0
      %309 = vperm.xlu0 %308, %v307
      %v310 = vpop.permute.xlu0 %309
      %vm311 = vcmp.eq.s32.totalorder %v310, 1
      %v312 = vsel %vm311, %v304, %v135
      %v313 = vsel %vm311, %v302, %v136
      %s314 = scalar_lea.vmem [#allocation6], 32
      %v315 = vld [vmem:[%s314] sm:$0xff]
      %v316 = vld [vmem:[%s314 + $0x8] sm:$0xff]
      %v317 = vld [vmem:[%s314 + $0x10] sm:$0xff]
      %v318 = vld [vmem:[%s314 + $0x18] sm:$0xff]
      %319 = vmatprep.subr.mxu0 %v131
      %320 = vmatpush1.msra.mxu0 %v130
      %321 = vmatprep.subr.mxu0 %v127
      %322 = vmatpush1.msra.mxu0 %v126
      %323 = vmatprep.subr.mxu0 %v123
      %324 = vmatpush1.msra.mxu0 %v122
      %325 = vmatprep.subr.mxu0 %v119
      %326 = vmatpush1.msra.mxu0 %v118
      %327 = vmatprep.subr.mxu0 %v115
      %328 = vmatpush1.msra.mxu0 %v114
      %329 = vmatprep.subr.mxu0 %v111
      %330 = vmatpush1.msra.mxu0 %v110
      %331 = vmatprep.subr.mxu0 %v107
      %332 = vmatpush1.msra.mxu0 %v106
      %333 = vmatprep.subr.mxu0 %v103
      %334 = vmatpush1.msra.mxu0 %v102
      %335 = vmatprep.subr.mxu0 %v99
      %336 = vmatpush1.msra.mxu0 %v98
      %337 = vmatprep.subr.mxu0 %v95
      %338 = vmatpush1.msra.mxu0 %v94
      %339 = vmatprep.subr.mxu0 %v91
      %340 = vmatpush1.msra.mxu0 %v90
      %341 = vmatprep.subr.mxu0 %v87
      %342 = vmatpush1.msra.mxu0 %v86
      %343 = vmatprep.subr.mxu0 %v83
      %344 = vmatpush1.msra.mxu0 %v82
      %345 = vmatprep.subr.mxu0 %v79
      %346 = vmatpush1.msra.mxu0 %v78
      %347 = vmatprep.subr.mxu0 %v75
      %348 = vmatpush1.msra.mxu0 %v74
      %349 = vmatprep.subr.mxu0 %v71
      %350 = vmatpush1.msra.mxu0 %v70
      %351 = vmatprep.subr.mxu0 0.0
      %352 = vmatpush2.msra.mxu0 0.0
      %353 = vmatprep.subr.mxu0 0.0
      %354 = vmatpush2.msra.mxu0 0.0
      %355 = vmatprep.subr.mxu0 0.0
      %356 = vmatpush2.msra.mxu0 0.0
      %357 = vmatprep.subr.mxu0 0.0
      %358 = vmatpush2.msra.mxu0 0.0
      %359 = vmatprep.subr.mxu0 0.0
      %360 = vmatpush2.msra.mxu0 0.0
      %361 = vmatprep.subr.mxu0 0.0
      %362 = vmatpush2.msra.mxu0 0.0
      %363 = vmatprep.subr.mxu0 0.0
      %364 = vmatpush2.msra.mxu0 0.0
      %365 = vmatprep.subr.mxu0 0.0
      %366 = vmatpush2.msra.mxu0 0.0
      %367 = vmatprep.subr.mxu0 0.0
      %368 = vmatpush2.msra.mxu0 0.0
      %369 = vmatprep.subr.mxu0 0.0
      %370 = vmatpush2.msra.mxu0 0.0
      %371 = vmatprep.subr.mxu0 0.0
      %372 = vmatpush2.msra.mxu0 0.0
      %373 = vmatprep.subr.mxu0 0.0
      %374 = vmatpush2.msra.mxu0 0.0
      %375 = vmatprep.subr.mxu0 0.0
      %376 = vmatpush2.msra.mxu0 0.0
      %377 = vmatprep.subr.mxu0 0.0
      %378 = vmatpush2.msra.mxu0 0.0
      %379 = vmatprep.subr.mxu0 0.0
      %380 = vmatpush2.msra.mxu0 0.0
      %381 = vmatprep.subr.mxu0 0.0
      %382 = vmatpush2.msra.mxu0 0.0
      %383 = vmatprep.mubr.f32.mxu0 0.0
      %384 = vmatmul.mubr.f32.gmra.mxu0 %v312
      %v385 = vpop.f32.mrf.mxu0
      %v386 = vadd.f32 0.0, %v385
      %v387 = vpop.f32.mrf.mxu0
      %v388 = vadd.f32 0.0, %v387
      %389 = vdwg.mxu0
      %390 = vmatprep.subr.mxu0 %v133
      %391 = vmatpush1.msra.mxu0 %v132
      %392 = vmatprep.subr.mxu0 %v129
      %393 = vmatpush1.msra.mxu0 %v128
      %394 = vmatprep.subr.mxu0 %v125
      %395 = vmatpush1.msra.mxu0 %v124
      %396 = vmatprep.subr.mxu0 %v121
      %397 = vmatpush1.msra.mxu0 %v120
      %398 = vmatprep.subr.mxu0 %v117
      %399 = vmatpush1.msra.mxu0 %v116
      %400 = vmatprep.subr.mxu0 %v113
      %401 = vmatpush1.msra.mxu0 %v112
      %402 = vmatprep.subr.mxu0 %v109
      %403 = vmatpush1.msra.mxu0 %v108
      %404 = vmatprep.subr.mxu0 %v105
      %405 = vmatpush1.msra.mxu0 %v104
      %406 = vmatprep.subr.mxu0 %v101
      %407 = vmatpush1.msra.mxu0 %v100
      %408 = vmatprep.subr.mxu0 %v97
      %409 = vmatpush1.msra.mxu0 %v96
      %410 = vmatprep.subr.mxu0 %v93
      %411 = vmatpush1.msra.mxu0 %v92
      %412 = vmatprep.subr.mxu0 %v89
      %413 = vmatpush1.msra.mxu0 %v88
      %414 = vmatprep.subr.mxu0 %v85
      %415 = vmatpush1.msra.mxu0 %v84
      %416 = vmatprep.subr.mxu0 %v81
      %417 = vmatpush1.msra.mxu0 %v80
      %418 = vmatprep.subr.mxu0 %v77
      %419 = vmatpush1.msra.mxu0 %v76
      %420 = vmatprep.subr.mxu0 %v73
      %421 = vmatpush1.msra.mxu0 %v72
      %422 = vmatprep.subr.mxu0 0.0
      %423 = vmatpush2.msra.mxu0 0.0
      %424 = vmatprep.subr.mxu0 0.0
      %425 = vmatpush2.msra.mxu0 0.0
      %426 = vmatprep.subr.mxu0 0.0
      %427 = vmatpush2.msra.mxu0 0.0
      %428 = vmatprep.subr.mxu0 0.0
      %429 = vmatpush2.msra.mxu0 0.0
      %430 = vmatprep.subr.mxu0 0.0
      %431 = vmatpush2.msra.mxu0 0.0
      %432 = vmatprep.subr.mxu0 0.0
      %433 = vmatpush2.msra.mxu0 0.0
      %434 = vmatprep.subr.mxu0 0.0
      %435 = vmatpush2.msra.mxu0 0.0
      %436 = vmatprep.subr.mxu0 0.0
      %437 = vmatpush2.msra.mxu0 0.0
      %438 = vmatprep.subr.mxu0 0.0
      %439 = vmatpush2.msra.mxu0 0.0
      %440 = vmatprep.subr.mxu0 0.0
      %441 = vmatpush2.msra.mxu0 0.0
      %442 = vmatprep.subr.mxu0 0.0
      %443 = vmatpush2.msra.mxu0 0.0
      %444 = vmatprep.subr.mxu0 0.0
      %445 = vmatpush2.msra.mxu0 0.0
      %446 = vmatprep.subr.mxu0 0.0
      %447 = vmatpush2.msra.mxu0 0.0
      %448 = vmatprep.subr.mxu0 0.0
      %449 = vmatpush2.msra.mxu0 0.0
      %450 = vmatprep.subr.mxu0 0.0
      %451 = vmatpush2.msra.mxu0 0.0
      %452 = vmatprep.subr.mxu0 0.0
      %453 = vmatpush2.msra.mxu0 0.0
      %454 = vmatprep.mubr.f32.mxu0 0.0
      %455 = vmatmul.mubr.f32.gmra.mxu0 %v312
      %v456 = vpop.f32.mrf.mxu0
      %v457 = vadd.f32 0.0, %v456
      %v458 = vpop.f32.mrf.mxu0
      %v459 = vadd.f32 0.0, %v458
      %460 = vdwg.mxu0
      %v461 = vadd.f32 %v315, %v386
      %v462 = vadd.f32 %v316, %v388
      %v463 = vadd.f32 %v317, %v457
      %v464 = vadd.f32 %v318, %v459
      %v465 = vmul.f32 %v461, 0.5
      %v466 = vtanh.pop %v465
      %v467 = vadd.f32 %v466, 1.0
      %v468 = vmul.f32 %v467, 0.5
      %v469 = vmul.f32 %v462, 0.5
      %v470 = vtanh.pop %v469
      %v471 = vadd.f32 %v470, 1.0
      %v472 = vmul.f32 %v471, 0.5
      %v473 = vtanh.pop %v463
      %v474 = vmul.f32 %v464, 0.5
      %v475 = vtanh.pop %v474
      %v476 = vadd.f32 %v475, 1.0
      %v477 = vmul.f32 %v476, 0.5
      %v478 = vmul.f32 %v472, %v313
      %v479 = vmul.f32 %v468, %v473
      %v480 = vadd.f32 %v478, %v479
      %v481 = vtanh.pop %v480
      %v482 = vmul.f32 %v477, %v481
      %s483 = sadd.s32 %s134, 1
      %v484 = vstv %s483
      %vm485 = vcmp.lt.s32.totalorder %v484, %v69
      %v486 = vsel %vm485, 1, 0
      %487 = vset.pattern.permute.xlu0 0
      %488 = vperm.xlu0 %487, %v486
      %v489 = vpop.permute.xlu0 %488
      %vm490 = vcmp.eq.s32.totalorder %v489, 1
      %v491 = vsel %vm490, %v482, %v312
      %v492 = vsel %vm490, %v480, %v313
      %s493 = scalar_lea.vmem [#allocation6], 64
      %v494 = vld [vmem:[%s493] sm:$0xff]
      %v495 = vld [vmem:[%s493 + $0x8] sm:$0xff]
      %v496 = vld [vmem:[%s493 + $0x10] sm:$0xff]
      %v497 = vld [vmem:[%s493 + $0x18] sm:$0xff]
      %498 = vmatprep.subr.mxu0 %v131
      %499 = vmatpush1.msra.mxu0 %v130
      %500 = vmatprep.subr.mxu0 %v127
      %501 = vmatpush1.msra.mxu0 %v126
      %502 = vmatprep.subr.mxu0 %v123
      %503 = vmatpush1.msra.mxu0 %v122
      %504 = vmatprep.subr.mxu0 %v119
      %505 = vmatpush1.msra.mxu0 %v118
      %506 = vmatprep.subr.mxu0 %v115
      %507 = vmatpush1.msra.mxu0 %v114
      %508 = vmatprep.subr.mxu0 %v111
      %509 = vmatpush1.msra.mxu0 %v110
      %510 = vmatprep.subr.mxu0 %v107
      %511 = vmatpush1.msra.mxu0 %v106
      %512 = vmatprep.subr.mxu0 %v103
      %513 = vmatpush1.msra.mxu0 %v102
      %514 = vmatprep.subr.mxu0 %v99
      %515 = vmatpush1.msra.mxu0 %v98
      %516 = vmatprep.subr.mxu0 %v95
      %517 = vmatpush1.msra.mxu0 %v94
      %518 = vmatprep.subr.mxu0 %v91
      %519 = vmatpush1.msra.mxu0 %v90
      %520 = vmatprep.subr.mxu0 %v87
      %521 = vmatpush1.msra.mxu0 %v86
      %522 = vmatprep.subr.mxu0 %v83
      %523 = vmatpush1.msra.mxu0 %v82
      %524 = vmatprep.subr.mxu0 %v79
      %525 = vmatpush1.msra.mxu0 %v78
      %526 = vmatprep.subr.mxu0 %v75
      %527 = vmatpush1.msra.mxu0 %v74
      %528 = vmatprep.subr.mxu0 %v71
      %529 = vmatpush1.msra.mxu0 %v70
      %530 = vmatprep.subr.mxu0 0.0
      %531 = vmatpush2.msra.mxu0 0.0
      %532 = vmatprep.subr.mxu0 0.0
      %533 = vmatpush2.msra.mxu0 0.0
      %534 = vmatprep.subr.mxu0 0.0
      %535 = vmatpush2.msra.mxu0 0.0
      %536 = vmatprep.subr.mxu0 0.0
      %537 = vmatpush2.msra.mxu0 0.0
      %538 = vmatprep.subr.mxu0 0.0
      %539 = vmatpush2.msra.mxu0 0.0
      %540 = vmatprep.subr.mxu0 0.0
      %541 = vmatpush2.msra.mxu0 0.0
      %542 = vmatprep.subr.mxu0 0.0
      %543 = vmatpush2.msra.mxu0 0.0
      %544 = vmatprep.subr.mxu0 0.0
      %545 = vmatpush2.msra.mxu0 0.0
      %546 = vmatprep.subr.mxu0 0.0
      %547 = vmatpush2.msra.mxu0 0.0
      %548 = vmatprep.subr.mxu0 0.0
      %549 = vmatpush2.msra.mxu0 0.0
      %550 = vmatprep.subr.mxu0 0.0
      %551 = vmatpush2.msra.mxu0 0.0
      %552 = vmatprep.subr.mxu0 0.0
      %553 = vmatpush2.msra.mxu0 0.0
      %554 = vmatprep.subr.mxu0 0.0
      %555 = vmatpush2.msra.mxu0 0.0
      %556 = vmatprep.subr.mxu0 0.0
      %557 = vmatpush2.msra.mxu0 0.0
      %558 = vmatprep.subr.mxu0 0.0
      %559 = vmatpush2.msra.mxu0 0.0
      %560 = vmatprep.subr.mxu0 0.0
      %561 = vmatpush2.msra.mxu0 0.0
      %562 = vmatprep.mubr.f32.mxu0 0.0
      %563 = vmatmul.mubr.f32.gmra.mxu0 %v491
      %v564 = vpop.f32.mrf.mxu0
      %v565 = vadd.f32 0.0, %v564
      %v566 = vpop.f32.mrf.mxu0
      %v567 = vadd.f32 0.0, %v566
      %568 = vdwg.mxu0
      %569 = vmatprep.subr.mxu0 %v133
      %570 = vmatpush1.msra.mxu0 %v132
      %571 = vmatprep.subr.mxu0 %v129
      %572 = vmatpush1.msra.mxu0 %v128
      %573 = vmatprep.subr.mxu0 %v125
      %574 = vmatpush1.msra.mxu0 %v124
      %575 = vmatprep.subr.mxu0 %v121
      %576 = vmatpush1.msra.mxu0 %v120
      %577 = vmatprep.subr.mxu0 %v117
      %578 = vmatpush1.msra.mxu0 %v116
      %579 = vmatprep.subr.mxu0 %v113
      %580 = vmatpush1.msra.mxu0 %v112
      %581 = vmatprep.subr.mxu0 %v109
      %582 = vmatpush1.msra.mxu0 %v108
      %583 = vmatprep.subr.mxu0 %v105
      %584 = vmatpush1.msra.mxu0 %v104
      %585 = vmatprep.subr.mxu0 %v101
      %586 = vmatpush1.msra.mxu0 %v100
      %587 = vmatprep.subr.mxu0 %v97
      %588 = vmatpush1.msra.mxu0 %v96
      %589 = vmatprep.subr.mxu0 %v93
      %590 = vmatpush1.msra.mxu0 %v92
      %591 = vmatprep.subr.mxu0 %v89
      %592 = vmatpush1.msra.mxu0 %v88
      %593 = vmatprep.subr.mxu0 %v85
      %594 = vmatpush1.msra.mxu0 %v84
      %595 = vmatprep.subr.mxu0 %v81
      %596 = vmatpush1.msra.mxu0 %v80
      %597 = vmatprep.subr.mxu0 %v77
      %598 = vmatpush1.msra.mxu0 %v76
      %599 = vmatprep.subr.mxu0 %v73
      %600 = vmatpush1.msra.mxu0 %v72
      %601 = vmatprep.subr.mxu0 0.0
      %602 = vmatpush2.msra.mxu0 0.0
      %603 = vmatprep.subr.mxu0 0.0
      %604 = vmatpush2.msra.mxu0 0.0
      %605 = vmatprep.subr.mxu0 0.0
      %606 = vmatpush2.msra.mxu0 0.0
      %607 = vmatprep.subr.mxu0 0.0
      %608 = vmatpush2.msra.mxu0 0.0
      %609 = vmatprep.subr.mxu0 0.0
      %610 = vmatpush2.msra.mxu0 0.0
      %611 = vmatprep.subr.mxu0 0.0
      %612 = vmatpush2.msra.mxu0 0.0
      %613 = vmatprep.subr.mxu0 0.0
      %614 = vmatpush2.msra.mxu0 0.0
      %615 = vmatprep.subr.mxu0 0.0
      %616 = vmatpush2.msra.mxu0 0.0
      %617 = vmatprep.subr.mxu0 0.0
      %618 = vmatpush2.msra.mxu0 0.0
      %619 = vmatprep.subr.mxu0 0.0
      %620 = vmatpush2.msra.mxu0 0.0
      %621 = vmatprep.subr.mxu0 0.0
      %622 = vmatpush2.msra.mxu0 0.0
      %623 = vmatprep.subr.mxu0 0.0
      %624 = vmatpush2.msra.mxu0 0.0
      %625 = vmatprep.subr.mxu0 0.0
      %626 = vmatpush2.msra.mxu0 0.0
      %627 = vmatprep.subr.mxu0 0.0
      %628 = vmatpush2.msra.mxu0 0.0
      %629 = vmatprep.subr.mxu0 0.0
      %630 = vmatpush2.msra.mxu0 0.0
      %631 = vmatprep.subr.mxu0 0.0
      %632 = vmatpush2.msra.mxu0 0.0
      %633 = vmatprep.mubr.f32.mxu0 0.0
      %634 = vmatmul.mubr.f32.gmra.mxu0 %v491
      %v635 = vpop.f32.mrf.mxu0
      %v636 = vadd.f32 0.0, %v635
      %v637 = vpop.f32.mrf.mxu0
      %v638 = vadd.f32 0.0, %v637
      %639 = vdwg.mxu0
      %v640 = vadd.f32 %v494, %v565
      %v641 = vadd.f32 %v495, %v567
      %v642 = vadd.f32 %v496, %v636
      %v643 = vadd.f32 %v497, %v638
      %v644 = vmul.f32 %v640, 0.5
      %v645 = vtanh.pop %v644
      %v646 = vadd.f32 %v645, 1.0
      %v647 = vmul.f32 %v646, 0.5
      %v648 = vmul.f32 %v641, 0.5
      %v649 = vtanh.pop %v648
      %v650 = vadd.f32 %v649, 1.0
      %v651 = vmul.f32 %v650, 0.5
      %v652 = vtanh.pop %v642
      %v653 = vmul.f32 %v643, 0.5
      %v654 = vtanh.pop %v653
      %v655 = vadd.f32 %v654, 1.0
      %v656 = vmul.f32 %v655, 0.5
      %v657 = vmul.f32 %v651, %v492
      %v658 = vmul.f32 %v647, %v652
      %v659 = vadd.f32 %v657, %v658
      %v660 = vtanh.pop %v659
      %v661 = vmul.f32 %v656, %v660
      %s662 = sadd.s32 %s134, 2
      %v663 = vstv %s662
      %vm664 = vcmp.lt.s32.totalorder %v663, %v69
      %v665 = vsel %vm664, 1, 0
      %666 = vset.pattern.permute.xlu0 0
      %667 = vperm.xlu0 %666, %v665
      %v668 = vpop.permute.xlu0 %667
      %vm669 = vcmp.eq.s32.totalorder %v668, 1
      %v670 = vsel %vm669, %v661, %v491
      %v671 = vsel %vm669, %v659, %v492
      %s672 = scalar_lea.vmem [#allocation6], 96
      %v673 = vld [vmem:[%s672] sm:$0xff]
      %v674 = vld [vmem:[%s672 + $0x8] sm:$0xff]
      %v675 = vld [vmem:[%s672 + $0x10] sm:$0xff]
      %v676 = vld [vmem:[%s672 + $0x18] sm:$0xff]
      %677 = vmatprep.subr.mxu0 %v131
      %678 = vmatpush1.msra.mxu0 %v130
      %679 = vmatprep.subr.mxu0 %v127
      %680 = vmatpush1.msra.mxu0 %v126
      %681 = vmatprep.subr.mxu0 %v123
      %682 = vmatpush1.msra.mxu0 %v122
      %683 = vmatprep.subr.mxu0 %v119
      %684 = vmatpush1.msra.mxu0 %v118
      %685 = vmatprep.subr.mxu0 %v115
      %686 = vmatpush1.msra.mxu0 %v114
      %687 = vmatprep.subr.mxu0 %v111
      %688 = vmatpush1.msra.mxu0 %v110
      %689 = vmatprep.subr.mxu0 %v107
      %690 = vmatpush1.msra.mxu0 %v106
      %691 = vmatprep.subr.mxu0 %v103
      %692 = vmatpush1.msra.mxu0 %v102
      %693 = vmatprep.subr.mxu0 %v99
      %694 = vmatpush1.msra.mxu0 %v98
      %695 = vmatprep.subr.mxu0 %v95
      %696 = vmatpush1.msra.mxu0 %v94
      %697 = vmatprep.subr.mxu0 %v91
      %698 = vmatpush1.msra.mxu0 %v90
      %699 = vmatprep.subr.mxu0 %v87
      %700 = vmatpush1.msra.mxu0 %v86
      %701 = vmatprep.subr.mxu0 %v83
      %702 = vmatpush1.msra.mxu0 %v82
      %703 = vmatprep.subr.mxu0 %v79
      %704 = vmatpush1.msra.mxu0 %v78
      %705 = vmatprep.subr.mxu0 %v75
      %706 = vmatpush1.msra.mxu0 %v74
      %707 = vmatprep.subr.mxu0 %v71
      %708 = vmatpush1.msra.mxu0 %v70
      %709 = vmatprep.subr.mxu0 0.0
      %710 = vmatpush2.msra.mxu0 0.0
      %711 = vmatprep.subr.mxu0 0.0
      %712 = vmatpush2.msra.mxu0 0.0
      %713 = vmatprep.subr.mxu0 0.0
      %714 = vmatpush2.msra.mxu0 0.0
      %715 = vmatprep.subr.mxu0 0.0
      %716 = vmatpush2.msra.mxu0 0.0
      %717 = vmatprep.subr.mxu0 0.0
      %718 = vmatpush2.msra.mxu0 0.0
      %719 = vmatprep.subr.mxu0 0.0
      %720 = vmatpush2.msra.mxu0 0.0
      %721 = vmatprep.subr.mxu0 0.0
      %722 = vmatpush2.msra.mxu0 0.0
      %723 = vmatprep.subr.mxu0 0.0
      %724 = vmatpush2.msra.mxu0 0.0
      %725 = vmatprep.subr.mxu0 0.0
      %726 = vmatpush2.msra.mxu0 0.0
      %727 = vmatprep.subr.mxu0 0.0
      %728 = vmatpush2.msra.mxu0 0.0
      %729 = vmatprep.subr.mxu0 0.0
      %730 = vmatpush2.msra.mxu0 0.0
      %731 = vmatprep.subr.mxu0 0.0
      %732 = vmatpush2.msra.mxu0 0.0
      %733 = vmatprep.subr.mxu0 0.0
      %734 = vmatpush2.msra.mxu0 0.0
      %735 = vmatprep.subr.mxu0 0.0
      %736 = vmatpush2.msra.mxu0 0.0
      %737 = vmatprep.subr.mxu0 0.0
      %738 = vmatpush2.msra.mxu0 0.0
      %739 = vmatprep.subr.mxu0 0.0
      %740 = vmatpush2.msra.mxu0 0.0
      %741 = vmatprep.mubr.f32.mxu0 0.0
      %742 = vmatmul.mubr.f32.gmra.mxu0 %v670
      %v743 = vpop.f32.mrf.mxu0
      %v744 = vadd.f32 0.0, %v743
      %v745 = vpop.f32.mrf.mxu0
      %v746 = vadd.f32 0.0, %v745
      %747 = vdwg.mxu0
      %748 = vmatprep.subr.mxu0 %v133
      %749 = vmatpush1.msra.mxu0 %v132
      %750 = vmatprep.subr.mxu0 %v129
      %751 = vmatpush1.msra.mxu0 %v128
      %752 = vmatprep.subr.mxu0 %v125
      %753 = vmatpush1.msra.mxu0 %v124
      %754 = vmatprep.subr.mxu0 %v121
      %755 = vmatpush1.msra.mxu0 %v120
      %756 = vmatprep.subr.mxu0 %v117
      %757 = vmatpush1.msra.mxu0 %v116
      %758 = vmatprep.subr.mxu0 %v113
      %759 = vmatpush1.msra.mxu0 %v112
      %760 = vmatprep.subr.mxu0 %v109
      %761 = vmatpush1.msra.mxu0 %v108
      %762 = vmatprep.subr.mxu0 %v105
      %763 = vmatpush1.msra.mxu0 %v104
      %764 = vmatprep.subr.mxu0 %v101
      %765 = vmatpush1.msra.mxu0 %v100
      %766 = vmatprep.subr.mxu0 %v97
      %767 = vmatpush1.msra.mxu0 %v96
      %768 = vmatprep.subr.mxu0 %v93
      %769 = vmatpush1.msra.mxu0 %v92
      %770 = vmatprep.subr.mxu0 %v89
      %771 = vmatpush1.msra.mxu0 %v88
      %772 = vmatprep.subr.mxu0 %v85
      %773 = vmatpush1.msra.mxu0 %v84
      %774 = vmatprep.subr.mxu0 %v81
      %775 = vmatpush1.msra.mxu0 %v80
      %776 = vmatprep.subr.mxu0 %v77
      %777 = vmatpush1.msra.mxu0 %v76
      %778 = vmatprep.subr.mxu0 %v73
      %779 = vmatpush1.msra.mxu0 %v72
      %780 = vmatprep.subr.mxu0 0.0
      %781 = vmatpush2.msra.mxu0 0.0
      %782 = vmatprep.subr.mxu0 0.0
      %783 = vmatpush2.msra.mxu0 0.0
      %784 = vmatprep.subr.mxu0 0.0
      %785 = vmatpush2.msra.mxu0 0.0
      %786 = vmatprep.subr.mxu0 0.0
      %787 = vmatpush2.msra.mxu0 0.0
      %788 = vmatprep.subr.mxu0 0.0
      %789 = vmatpush2.msra.mxu0 0.0
      %790 = vmatprep.subr.mxu0 0.0
      %791 = vmatpush2.msra.mxu0 0.0
      %792 = vmatprep.subr.mxu0 0.0
      %793 = vmatpush2.msra.mxu0 0.0
      %794 = vmatprep.subr.mxu0 0.0
      %795 = vmatpush2.msra.mxu0 0.0
      %796 = vmatprep.subr.mxu0 0.0
      %797 = vmatpush2.msra.mxu0 0.0
      %798 = vmatprep.subr.mxu0 0.0
      %799 = vmatpush2.msra.mxu0 0.0
      %800 = vmatprep.subr.mxu0 0.0
      %801 = vmatpush2.msra.mxu0 0.0
      %802 = vmatprep.subr.mxu0 0.0
      %803 = vmatpush2.msra.mxu0 0.0
      %804 = vmatprep.subr.mxu0 0.0
      %805 = vmatpush2.msra.mxu0 0.0
      %806 = vmatprep.subr.mxu0 0.0
      %807 = vmatpush2.msra.mxu0 0.0
      %808 = vmatprep.subr.mxu0 0.0
      %809 = vmatpush2.msra.mxu0 0.0
      %810 = vmatprep.subr.mxu0 0.0
      %811 = vmatpush2.msra.mxu0 0.0
      %812 = vmatprep.mubr.f32.mxu0 0.0
      %813 = vmatmul.mubr.f32.gmra.mxu0 %v670
      %v814 = vpop.f32.mrf.mxu0
      %v815 = vadd.f32 0.0, %v814
      %v816 = vpop.f32.mrf.mxu0
      %v817 = vadd.f32 0.0, %v816
      %818 = vdwg.mxu0
      %v819 = vadd.f32 %v673, %v744
      %v820 = vadd.f32 %v674, %v746
      %v821 = vadd.f32 %v675, %v815
      %v822 = vadd.f32 %v676, %v817
      %v823 = vmul.f32 %v819, 0.5
      %v824 = vtanh.pop %v823
      %v825 = vadd.f32 %v824, 1.0
      %v826 = vmul.f32 %v825, 0.5
      %v827 = vmul.f32 %v820, 0.5
      %v828 = vtanh.pop %v827
      %v829 = vadd.f32 %v828, 1.0
      %v830 = vmul.f32 %v829, 0.5
      %v831 = vtanh.pop %v821
      %v832 = vmul.f32 %v822, 0.5
      %v833 = vtanh.pop %v832
      %v834 = vadd.f32 %v833, 1.0
      %v835 = vmul.f32 %v834, 0.5
      %v836 = vmul.f32 %v830, %v671
      %v837 = vmul.f32 %v826, %v831
      %v838 = vadd.f32 %v836, %v837
      %v839 = vtanh.pop %v838
      %v840 = vmul.f32 %v835, %v839
      %s841 = sadd.s32 %s134, 3
      %v842 = vstv %s841
      %vm843 = vcmp.lt.s32.totalorder %v842, %v69
      %v844 = vsel %vm843, 1, 0
      %845 = vset.pattern.permute.xlu0 0
      %846 = vperm.xlu0 %845, %v844
      %v847 = vpop.permute.xlu0 %846
      %vm848 = vcmp.eq.s32.totalorder %v847, 1
      %v849 = vsel %vm848, %v840, %v670
      %v850 = vsel %vm848, %v838, %v671
      %s851 = scalar_lea.vmem [#allocation6], 128
      %v852 = vld [vmem:[%s851] sm:$0xff]
      %v853 = vld [vmem:[%s851 + $0x8] sm:$0xff]
      %v854 = vld [vmem:[%s851 + $0x10] sm:$0xff]
      %v855 = vld [vmem:[%s851 + $0x18] sm:$0xff]
      %856 = vmatprep.subr.mxu0 %v131
      %857 = vmatpush1.msra.mxu0 %v130
      %858 = vmatprep.subr.mxu0 %v127
      %859 = vmatpush1.msra.mxu0 %v126
      %860 = vmatprep.subr.mxu0 %v123
      %861 = vmatpush1.msra.mxu0 %v122
      %862 = vmatprep.subr.mxu0 %v119
      %863 = vmatpush1.msra.mxu0 %v118
      %864 = vmatprep.subr.mxu0 %v115
      %865 = vmatpush1.msra.mxu0 %v114
      %866 = vmatprep.subr.mxu0 %v111
      %867 = vmatpush1.msra.mxu0 %v110
      %868 = vmatprep.subr.mxu0 %v107
      %869 = vmatpush1.msra.mxu0 %v106
      %870 = vmatprep.subr.mxu0 %v103
      %871 = vmatpush1.msra.mxu0 %v102
      %872 = vmatprep.subr.mxu0 %v99
      %873 = vmatpush1.msra.mxu0 %v98
      %874 = vmatprep.subr.mxu0 %v95
      %875 = vmatpush1.msra.mxu0 %v94
      %876 = vmatprep.subr.mxu0 %v91
      %877 = vmatpush1.msra.mxu0 %v90
      %878 = vmatprep.subr.mxu0 %v87
      %879 = vmatpush1.msra.mxu0 %v86
      %880 = vmatprep.subr.mxu0 %v83
      %881 = vmatpush1.msra.mxu0 %v82
      %882 = vmatprep.subr.mxu0 %v79
      %883 = vmatpush1.msra.mxu0 %v78
      %884 = vmatprep.subr.mxu0 %v75
      %885 = vmatpush1.msra.mxu0 %v74
      %886 = vmatprep.subr.mxu0 %v71
      %887 = vmatpush1.msra.mxu0 %v70
      %888 = vmatprep.subr.mxu0 0.0
      %889 = vmatpush2.msra.mxu0 0.0
      %890 = vmatprep.subr.mxu0 0.0
      %891 = vmatpush2.msra.mxu0 0.0
      %892 = vmatprep.subr.mxu0 0.0
      %893 = vmatpush2.msra.mxu0 0.0
      %894 = vmatprep.subr.mxu0 0.0
      %895 = vmatpush2.msra.mxu0 0.0
      %896 = vmatprep.subr.mxu0 0.0
      %897 = vmatpush2.msra.mxu0 0.0
      %898 = vmatprep.subr.mxu0 0.0
      %899 = vmatpush2.msra.mxu0 0.0
      %900 = vmatprep.subr.mxu0 0.0
      %901 = vmatpush2.msra.mxu0 0.0
      %902 = vmatprep.subr.mxu0 0.0
      %903 = vmatpush2.msra.mxu0 0.0
      %904 = vmatprep.subr.mxu0 0.0
      %905 = vmatpush2.msra.mxu0 0.0
      %906 = vmatprep.subr.mxu0 0.0
      %907 = vmatpush2.msra.mxu0 0.0
      %908 = vmatprep.subr.mxu0 0.0
      %909 = vmatpush2.msra.mxu0 0.0
      %910 = vmatprep.subr.mxu0 0.0
      %911 = vmatpush2.msra.mxu0 0.0
      %912 = vmatprep.subr.mxu0 0.0
      %913 = vmatpush2.msra.mxu0 0.0
      %914 = vmatprep.subr.mxu0 0.0
      %915 = vmatpush2.msra.mxu0 0.0
      %916 = vmatprep.subr.mxu0 0.0
      %917 = vmatpush2.msra.mxu0 0.0
      %918 = vmatprep.subr.mxu0 0.0
      %919 = vmatpush2.msra.mxu0 0.0
      %920 = vmatprep.mubr.f32.mxu0 0.0
      %921 = vmatmul.mubr.f32.gmra.mxu0 %v849
      %v922 = vpop.f32.mrf.mxu0
      %v923 = vadd.f32 0.0, %v922
      %v924 = vpop.f32.mrf.mxu0
      %v925 = vadd.f32 0.0, %v924
      %926 = vdwg.mxu0
      %927 = vmatprep.subr.mxu0 %v133
      %928 = vmatpush1.msra.mxu0 %v132
      %929 = vmatprep.subr.mxu0 %v129
      %930 = vmatpush1.msra.mxu0 %v128
      %931 = vmatprep.subr.mxu0 %v125
      %932 = vmatpush1.msra.mxu0 %v124
      %933 = vmatprep.subr.mxu0 %v121
      %934 = vmatpush1.msra.mxu0 %v120
      %935 = vmatprep.subr.mxu0 %v117
      %936 = vmatpush1.msra.mxu0 %v116
      %937 = vmatprep.subr.mxu0 %v113
      %938 = vmatpush1.msra.mxu0 %v112
      %939 = vmatprep.subr.mxu0 %v109
      %940 = vmatpush1.msra.mxu0 %v108
      %941 = vmatprep.subr.mxu0 %v105
      %942 = vmatpush1.msra.mxu0 %v104
      %943 = vmatprep.subr.mxu0 %v101
      %944 = vmatpush1.msra.mxu0 %v100
      %945 = vmatprep.subr.mxu0 %v97
      %946 = vmatpush1.msra.mxu0 %v96
      %947 = vmatprep.subr.mxu0 %v93
      %948 = vmatpush1.msra.mxu0 %v92
      %949 = vmatprep.subr.mxu0 %v89
      %950 = vmatpush1.msra.mxu0 %v88
      %951 = vmatprep.subr.mxu0 %v85
      %952 = vmatpush1.msra.mxu0 %v84
      %953 = vmatprep.subr.mxu0 %v81
      %954 = vmatpush1.msra.mxu0 %v80
      %955 = vmatprep.subr.mxu0 %v77
      %956 = vmatpush1.msra.mxu0 %v76
      %957 = vmatprep.subr.mxu0 %v73
      %958 = vmatpush1.msra.mxu0 %v72
      %959 = vmatprep.subr.mxu0 0.0
      %960 = vmatpush2.msra.mxu0 0.0
      %961 = vmatprep.subr.mxu0 0.0
      %962 = vmatpush2.msra.mxu0 0.0
      %963 = vmatprep.subr.mxu0 0.0
      %964 = vmatpush2.msra.mxu0 0.0
      %965 = vmatprep.subr.mxu0 0.0
      %966 = vmatpush2.msra.mxu0 0.0
      %967 = vmatprep.subr.mxu0 0.0
      %968 = vmatpush2.msra.mxu0 0.0
      %969 = vmatprep.subr.mxu0 0.0
      %970 = vmatpush2.msra.mxu0 0.0
      %971 = vmatprep.subr.mxu0 0.0
      %972 = vmatpush2.msra.mxu0 0.0
      %973 = vmatprep.subr.mxu0 0.0
      %974 = vmatpush2.msra.mxu0 0.0
      %975 = vmatprep.subr.mxu0 0.0
      %976 = vmatpush2.msra.mxu0 0.0
      %977 = vmatprep.subr.mxu0 0.0
      %978 = vmatpush2.msra.mxu0 0.0
      %979 = vmatprep.subr.mxu0 0.0
      %980 = vmatpush2.msra.mxu0 0.0
      %981 = vmatprep.subr.mxu0 0.0
      %982 = vmatpush2.msra.mxu0 0.0
      %983 = vmatprep.subr.mxu0 0.0
      %984 = vmatpush2.msra.mxu0 0.0
      %985 = vmatprep.subr.mxu0 0.0
      %986 = vmatpush2.msra.mxu0 0.0
      %987 = vmatprep.subr.mxu0 0.0
      %988 = vmatpush2.msra.mxu0 0.0
      %989 = vmatprep.subr.mxu0 0.0
      %990 = vmatpush2.msra.mxu0 0.0
      %991 = vmatprep.mubr.f32.mxu0 0.0
      %992 = vmatmul.mubr.f32.gmra.mxu0 %v849
      %v993 = vpop.f32.mrf.mxu0
      %v994 = vadd.f32 0.0, %v993
      %v995 = vpop.f32.mrf.mxu0
      %v996 = vadd.f32 0.0, %v995
      %997 = vdwg.mxu0
      %v998 = vadd.f32 %v852, %v923
      %v999 = vadd.f32 %v853, %v925
      %v1000 = vadd.f32 %v854, %v994
      %v1001 = vadd.f32 %v855, %v996
      %v1002 = vmul.f32 %v998, 0.5
      %v1003 = vtanh.pop %v1002
      %v1004 = vadd.f32 %v1003, 1.0
      %v1005 = vmul.f32 %v1004, 0.5
      %v1006 = vmul.f32 %v999, 0.5
      %v1007 = vtanh.pop %v1006
      %v1008 = vadd.f32 %v1007, 1.0
      %v1009 = vmul.f32 %v1008, 0.5
      %v1010 = vtanh.pop %v1000
      %v1011 = vmul.f32 %v1001, 0.5
      %v1012 = vtanh.pop %v1011
      %v1013 = vadd.f32 %v1012, 1.0
      %v1014 = vmul.f32 %v1013, 0.5
      %v1015 = vmul.f32 %v1009, %v850
      %v1016 = vmul.f32 %v1005, %v1010
      %v1017 = vadd.f32 %v1015, %v1016
      %v1018 = vtanh.pop %v1017
      %v1019 = vmul.f32 %v1014, %v1018
      %s1020 = sadd.s32 %s134, 4
      %v1021 = vstv %s1020
      %vm1022 = vcmp.lt.s32.totalorder %v1021, %v69
      %v1023 = vsel %vm1022, 1, 0
      %1024 = vset.pattern.permute.xlu0 0
      %1025 = vperm.xlu0 %1024, %v1023
      %v1026 = vpop.permute.xlu0 %1025
      %vm1027 = vcmp.eq.s32.totalorder %v1026, 1
      %v1028 = vsel %vm1027, %v1019, %v849
      %v1029 = vsel %vm1027, %v1017, %v850
      %s1030 = scalar_lea.vmem [#allocation6], 160
      %v1031 = vld [vmem:[%s1030] sm:$0xff]
      %v1032 = vld [vmem:[%s1030 + $0x8] sm:$0xff]
      %v1033 = vld [vmem:[%s1030 + $0x10] sm:$0xff]
      %v1034 = vld [vmem:[%s1030 + $0x18] sm:$0xff]
      %1035 = vmatprep.subr.mxu0 %v131
      %1036 = vmatpush1.msra.mxu0 %v130
      %1037 = vmatprep.subr.mxu0 %v127
      %1038 = vmatpush1.msra.mxu0 %v126
      %1039 = vmatprep.subr.mxu0 %v123
      %1040 = vmatpush1.msra.mxu0 %v122
      %1041 = vmatprep.subr.mxu0 %v119
      %1042 = vmatpush1.msra.mxu0 %v118
      %1043 = vmatprep.subr.mxu0 %v115
      %1044 = vmatpush1.msra.mxu0 %v114
      %1045 = vmatprep.subr.mxu0 %v111
      %1046 = vmatpush1.msra.mxu0 %v110
      %1047 = vmatprep.subr.mxu0 %v107
      %1048 = vmatpush1.msra.mxu0 %v106
      %1049 = vmatprep.subr.mxu0 %v103
      %1050 = vmatpush1.msra.mxu0 %v102
      %1051 = vmatprep.subr.mxu0 %v99
      %1052 = vmatpush1.msra.mxu0 %v98
      %1053 = vmatprep.subr.mxu0 %v95
      %1054 = vmatpush1.msra.mxu0 %v94
      %1055 = vmatprep.subr.mxu0 %v91
      %1056 = vmatpush1.msra.mxu0 %v90
      %1057 = vmatprep.subr.mxu0 %v87
      %1058 = vmatpush1.msra.mxu0 %v86
      %1059 = vmatprep.subr.mxu0 %v83
      %1060 = vmatpush1.msra.mxu0 %v82
      %1061 = vmatprep.subr.mxu0 %v79
      %1062 = vmatpush1.msra.mxu0 %v78
      %1063 = vmatprep.subr.mxu0 %v75
      %1064 = vmatpush1.msra.mxu0 %v74
      %1065 = vmatprep.subr.mxu0 %v71
      %1066 = vmatpush1.msra.mxu0 %v70
      %1067 = vmatprep.subr.mxu0 0.0
      %1068 = vmatpush2.msra.mxu0 0.0
      %1069 = vmatprep.subr.mxu0 0.0
      %1070 = vmatpush2.msra.mxu0 0.0
      %1071 = vmatprep.subr.mxu0 0.0
      %1072 = vmatpush2.msra.mxu0 0.0
      %1073 = vmatprep.subr.mxu0 0.0
      %1074 = vmatpush2.msra.mxu0 0.0
      %1075 = vmatprep.subr.mxu0 0.0
      %1076 = vmatpush2.msra.mxu0 0.0
      %1077 = vmatprep.subr.mxu0 0.0
      %1078 = vmatpush2.msra.mxu0 0.0
      %1079 = vmatprep.subr.mxu0 0.0
      %1080 = vmatpush2.msra.mxu0 0.0
      %1081 = vmatprep.subr.mxu0 0.0
      %1082 = vmatpush2.msra.mxu0 0.0
      %1083 = vmatprep.subr.mxu0 0.0
      %1084 = vmatpush2.msra.mxu0 0.0
      %1085 = vmatprep.subr.mxu0 0.0
      %1086 = vmatpush2.msra.mxu0 0.0
      %1087 = vmatprep.subr.mxu0 0.0
      %1088 = vmatpush2.msra.mxu0 0.0
      %1089 = vmatprep.subr.mxu0 0.0
      %1090 = vmatpush2.msra.mxu0 0.0
      %1091 = vmatprep.subr.mxu0 0.0
      %1092 = vmatpush2.msra.mxu0 0.0
      %1093 = vmatprep.subr.mxu0 0.0
      %1094 = vmatpush2.msra.mxu0 0.0
      %1095 = vmatprep.subr.mxu0 0.0
      %1096 = vmatpush2.msra.mxu0 0.0
      %1097 = vmatprep.subr.mxu0 0.0
      %1098 = vmatpush2.msra.mxu0 0.0
      %1099 = vmatprep.mubr.f32.mxu0 0.0
      %1100 = vmatmul.mubr.f32.gmra.mxu0 %v1028
      %v1101 = vpop.f32.mrf.mxu0
      %v1102 = vadd.f32 0.0, %v1101
      %v1103 = vpop.f32.mrf.mxu0
      %v1104 = vadd.f32 0.0, %v1103
      %1105 = vdwg.mxu0
      %1106 = vmatprep.subr.mxu0 %v133
      %1107 = vmatpush1.msra.mxu0 %v132
      %1108 = vmatprep.subr.mxu0 %v129
      %1109 = vmatpush1.msra.mxu0 %v128
      %1110 = vmatprep.subr.mxu0 %v125
      %1111 = vmatpush1.msra.mxu0 %v124
      %1112 = vmatprep.subr.mxu0 %v121
      %1113 = vmatpush1.msra.mxu0 %v120
      %1114 = vmatprep.subr.mxu0 %v117
      %1115 = vmatpush1.msra.mxu0 %v116
      %1116 = vmatprep.subr.mxu0 %v113
      %1117 = vmatpush1.msra.mxu0 %v112
      %1118 = vmatprep.subr.mxu0 %v109
      %1119 = vmatpush1.msra.mxu0 %v108
      %1120 = vmatprep.subr.mxu0 %v105
      %1121 = vmatpush1.msra.mxu0 %v104
      %1122 = vmatprep.subr.mxu0 %v101
      %1123 = vmatpush1.msra.mxu0 %v100
      %1124 = vmatprep.subr.mxu0 %v97
      %1125 = vmatpush1.msra.mxu0 %v96
      %1126 = vmatprep.subr.mxu0 %v93
      %1127 = vmatpush1.msra.mxu0 %v92
      %1128 = vmatprep.subr.mxu0 %v89
      %1129 = vmatpush1.msra.mxu0 %v88
      %1130 = vmatprep.subr.mxu0 %v85
      %1131 = vmatpush1.msra.mxu0 %v84
      %1132 = vmatprep.subr.mxu0 %v81
      %1133 = vmatpush1.msra.mxu0 %v80
      %1134 = vmatprep.subr.mxu0 %v77
      %1135 = vmatpush1.msra.mxu0 %v76
      %1136 = vmatprep.subr.mxu0 %v73
      %1137 = vmatpush1.msra.mxu0 %v72
      %1138 = vmatprep.subr.mxu0 0.0
      %1139 = vmatpush2.msra.mxu0 0.0
      %1140 = vmatprep.subr.mxu0 0.0
      %1141 = vmatpush2.msra.mxu0 0.0
      %1142 = vmatprep.subr.mxu0 0.0
      %1143 = vmatpush2.msra.mxu0 0.0
      %1144 = vmatprep.subr.mxu0 0.0
      %1145 = vmatpush2.msra.mxu0 0.0
      %1146 = vmatprep.subr.mxu0 0.0
      %1147 = vmatpush2.msra.mxu0 0.0
      %1148 = vmatprep.subr.mxu0 0.0
      %1149 = vmatpush2.msra.mxu0 0.0
      %1150 = vmatprep.subr.mxu0 0.0
      %1151 = vmatpush2.msra.mxu0 0.0
      %1152 = vmatprep.subr.mxu0 0.0
      %1153 = vmatpush2.msra.mxu0 0.0
      %1154 = vmatprep.subr.mxu0 0.0
      %1155 = vmatpush2.msra.mxu0 0.0
      %1156 = vmatprep.subr.mxu0 0.0
      %1157 = vmatpush2.msra.mxu0 0.0
      %1158 = vmatprep.subr.mxu0 0.0
      %1159 = vmatpush2.msra.mxu0 0.0
      %1160 = vmatprep.subr.mxu0 0.0
      %1161 = vmatpush2.msra.mxu0 0.0
      %1162 = vmatprep.subr.mxu0 0.0
      %1163 = vmatpush2.msra.mxu0 0.0
      %1164 = vmatprep.subr.mxu0 0.0
      %1165 = vmatpush2.msra.mxu0 0.0
      %1166 = vmatprep.subr.mxu0 0.0
      %1167 = vmatpush2.msra.mxu0 0.0
      %1168 = vmatprep.subr.mxu0 0.0
      %1169 = vmatpush2.msra.mxu0 0.0
      %1170 = vmatprep.mubr.f32.mxu0 0.0
      %1171 = vmatmul.mubr.f32.gmra.mxu0 %v1028
      %v1172 = vpop.f32.mrf.mxu0
      %v1173 = vadd.f32 0.0, %v1172
      %v1174 = vpop.f32.mrf.mxu0
      %v1175 = vadd.f32 0.0, %v1174
      %1176 = vdwg.mxu0
      %v1177 = vadd.f32 %v1031, %v1102
      %v1178 = vadd.f32 %v1032, %v1104
      %v1179 = vadd.f32 %v1033, %v1173
      %v1180 = vadd.f32 %v1034, %v1175
      %v1181 = vmul.f32 %v1177, 0.5
      %v1182 = vtanh.pop %v1181
      %v1183 = vadd.f32 %v1182, 1.0
      %v1184 = vmul.f32 %v1183, 0.5
      %v1185 = vmul.f32 %v1178, 0.5
      %v1186 = vtanh.pop %v1185
      %v1187 = vadd.f32 %v1186, 1.0
      %v1188 = vmul.f32 %v1187, 0.5
      %v1189 = vtanh.pop %v1179
      %v1190 = vmul.f32 %v1180, 0.5
      %v1191 = vtanh.pop %v1190
      %v1192 = vadd.f32 %v1191, 1.0
      %v1193 = vmul.f32 %v1192, 0.5
      %v1194 = vmul.f32 %v1188, %v1029
      %v1195 = vmul.f32 %v1184, %v1189
      %v1196 = vadd.f32 %v1194, %v1195
      %v1197 = vtanh.pop %v1196
      %v1198 = vmul.f32 %v1193, %v1197
      %s1199 = sadd.s32 %s134, 5
      %v1200 = vstv %s1199
      %vm1201 = vcmp.lt.s32.totalorder %v1200, %v69
      %v1202 = vsel %vm1201, 1, 0
      %1203 = vset.pattern.permute.xlu0 0
      %1204 = vperm.xlu0 %1203, %v1202
      %v1205 = vpop.permute.xlu0 %1204
      %vm1206 = vcmp.eq.s32.totalorder %v1205, 1
      %v1207 = vsel %vm1206, %v1198, %v1028
      %v1208 = vsel %vm1206, %v1196, %v1029
      %s1209 = scalar_lea.vmem [#allocation6], 192
      %v1210 = vld [vmem:[%s1209] sm:$0xff]
      %v1211 = vld [vmem:[%s1209 + $0x8] sm:$0xff]
      %v1212 = vld [vmem:[%s1209 + $0x10] sm:$0xff]
      %v1213 = vld [vmem:[%s1209 + $0x18] sm:$0xff]
      %1214 = vmatprep.subr.mxu0 %v131
      %1215 = vmatpush1.msra.mxu0 %v130
      %1216 = vmatprep.subr.mxu0 %v127
      %1217 = vmatpush1.msra.mxu0 %v126
      %1218 = vmatprep.subr.mxu0 %v123
      %1219 = vmatpush1.msra.mxu0 %v122
      %1220 = vmatprep.subr.mxu0 %v119
      %1221 = vmatpush1.msra.mxu0 %v118
      %1222 = vmatprep.subr.mxu0 %v115
      %1223 = vmatpush1.msra.mxu0 %v114
      %1224 = vmatprep.subr.mxu0 %v111
      %1225 = vmatpush1.msra.mxu0 %v110
      %1226 = vmatprep.subr.mxu0 %v107
      %1227 = vmatpush1.msra.mxu0 %v106
      %1228 = vmatprep.subr.mxu0 %v103
      %1229 = vmatpush1.msra.mxu0 %v102
      %1230 = vmatprep.subr.mxu0 %v99
      %1231 = vmatpush1.msra.mxu0 %v98
      %1232 = vmatprep.subr.mxu0 %v95
      %1233 = vmatpush1.msra.mxu0 %v94
      %1234 = vmatprep.subr.mxu0 %v91
      %1235 = vmatpush1.msra.mxu0 %v90
      %1236 = vmatprep.subr.mxu0 %v87
      %1237 = vmatpush1.msra.mxu0 %v86
      %1238 = vmatprep.subr.mxu0 %v83
      %1239 = vmatpush1.msra.mxu0 %v82
      %1240 = vmatprep.subr.mxu0 %v79
      %1241 = vmatpush1.msra.mxu0 %v78
      %1242 = vmatprep.subr.mxu0 %v75
      %1243 = vmatpush1.msra.mxu0 %v74
      %1244 = vmatprep.subr.mxu0 %v71
      %1245 = vmatpush1.msra.mxu0 %v70
      %1246 = vmatprep.subr.mxu0 0.0
      %1247 = vmatpush2.msra.mxu0 0.0
      %1248 = vmatprep.subr.mxu0 0.0
      %1249 = vmatpush2.msra.mxu0 0.0
      %1250 = vmatprep.subr.mxu0 0.0
      %1251 = vmatpush2.msra.mxu0 0.0
      %1252 = vmatprep.subr.mxu0 0.0
      %1253 = vmatpush2.msra.mxu0 0.0
      %1254 = vmatprep.subr.mxu0 0.0
      %1255 = vmatpush2.msra.mxu0 0.0
      %1256 = vmatprep.subr.mxu0 0.0
      %1257 = vmatpush2.msra.mxu0 0.0
      %1258 = vmatprep.subr.mxu0 0.0
      %1259 = vmatpush2.msra.mxu0 0.0
      %1260 = vmatprep.subr.mxu0 0.0
      %1261 = vmatpush2.msra.mxu0 0.0
      %1262 = vmatprep.subr.mxu0 0.0
      %1263 = vmatpush2.msra.mxu0 0.0
      %1264 = vmatprep.subr.mxu0 0.0
      %1265 = vmatpush2.msra.mxu0 0.0
      %1266 = vmatprep.subr.mxu0 0.0
      %1267 = vmatpush2.msra.mxu0 0.0
      %1268 = vmatprep.subr.mxu0 0.0
      %1269 = vmatpush2.msra.mxu0 0.0
      %1270 = vmatprep.subr.mxu0 0.0
      %1271 = vmatpush2.msra.mxu0 0.0
      %1272 = vmatprep.subr.mxu0 0.0
      %1273 = vmatpush2.msra.mxu0 0.0
      %1274 = vmatprep.subr.mxu0 0.0
      %1275 = vmatpush2.msra.mxu0 0.0
      %1276 = vmatprep.subr.mxu0 0.0
      %1277 = vmatpush2.msra.mxu0 0.0
      %1278 = vmatprep.mubr.f32.mxu0 0.0
      %1279 = vmatmul.mubr.f32.gmra.mxu0 %v1207
      %v1280 = vpop.f32.mrf.mxu0
      %v1281 = vadd.f32 0.0, %v1280
      %v1282 = vpop.f32.mrf.mxu0
      %v1283 = vadd.f32 0.0, %v1282
      %1284 = vdwg.mxu0
      %1285 = vmatprep.subr.mxu0 %v133
      %1286 = vmatpush1.msra.mxu0 %v132
      %1287 = vmatprep.subr.mxu0 %v129
      %1288 = vmatpush1.msra.mxu0 %v128
      %1289 = vmatprep.subr.mxu0 %v125
      %1290 = vmatpush1.msra.mxu0 %v124
      %1291 = vmatprep.subr.mxu0 %v121
      %1292 = vmatpush1.msra.mxu0 %v120
      %1293 = vmatprep.subr.mxu0 %v117
      %1294 = vmatpush1.msra.mxu0 %v116
      %1295 = vmatprep.subr.mxu0 %v113
      %1296 = vmatpush1.msra.mxu0 %v112
      %1297 = vmatprep.subr.mxu0 %v109
      %1298 = vmatpush1.msra.mxu0 %v108
      %1299 = vmatprep.subr.mxu0 %v105
      %1300 = vmatpush1.msra.mxu0 %v104
      %1301 = vmatprep.subr.mxu0 %v101
      %1302 = vmatpush1.msra.mxu0 %v100
      %1303 = vmatprep.subr.mxu0 %v97
      %1304 = vmatpush1.msra.mxu0 %v96
      %1305 = vmatprep.subr.mxu0 %v93
      %1306 = vmatpush1.msra.mxu0 %v92
      %1307 = vmatprep.subr.mxu0 %v89
      %1308 = vmatpush1.msra.mxu0 %v88
      %1309 = vmatprep.subr.mxu0 %v85
      %1310 = vmatpush1.msra.mxu0 %v84
      %1311 = vmatprep.subr.mxu0 %v81
      %1312 = vmatpush1.msra.mxu0 %v80
      %1313 = vmatprep.subr.mxu0 %v77
      %1314 = vmatpush1.msra.mxu0 %v76
      %1315 = vmatprep.subr.mxu0 %v73
      %1316 = vmatpush1.msra.mxu0 %v72
      %1317 = vmatprep.subr.mxu0 0.0
      %1318 = vmatpush2.msra.mxu0 0.0
      %1319 = vmatprep.subr.mxu0 0.0
      %1320 = vmatpush2.msra.mxu0 0.0
      %1321 = vmatprep.subr.mxu0 0.0
      %1322 = vmatpush2.msra.mxu0 0.0
      %1323 = vmatprep.subr.mxu0 0.0
      %1324 = vmatpush2.msra.mxu0 0.0
      %1325 = vmatprep.subr.mxu0 0.0
      %1326 = vmatpush2.msra.mxu0 0.0
      %1327 = vmatprep.subr.mxu0 0.0
      %1328 = vmatpush2.msra.mxu0 0.0
      %1329 = vmatprep.subr.mxu0 0.0
      %1330 = vmatpush2.msra.mxu0 0.0
      %1331 = vmatprep.subr.mxu0 0.0
      %1332 = vmatpush2.msra.mxu0 0.0
      %1333 = vmatprep.subr.mxu0 0.0
      %1334 = vmatpush2.msra.mxu0 0.0
      %1335 = vmatprep.subr.mxu0 0.0
      %1336 = vmatpush2.msra.mxu0 0.0
      %1337 = vmatprep.subr.mxu0 0.0
      %1338 = vmatpush2.msra.mxu0 0.0
      %1339 = vmatprep.subr.mxu0 0.0
      %1340 = vmatpush2.msra.mxu0 0.0
      %1341 = vmatprep.subr.mxu0 0.0
      %1342 = vmatpush2.msra.mxu0 0.0
      %1343 = vmatprep.subr.mxu0 0.0
      %1344 = vmatpush2.msra.mxu0 0.0
      %1345 = vmatprep.subr.mxu0 0.0
      %1346 = vmatpush2.msra.mxu0 0.0
      %1347 = vmatprep.subr.mxu0 0.0
      %1348 = vmatpush2.msra.mxu0 0.0
      %1349 = vmatprep.mubr.f32.mxu0 0.0
      %1350 = vmatmul.mubr.f32.gmra.mxu0 %v1207
      %v1351 = vpop.f32.mrf.mxu0
      %v1352 = vadd.f32 0.0, %v1351
      %v1353 = vpop.f32.mrf.mxu0
      %v1354 = vadd.f32 0.0, %v1353
      %1355 = vdwg.mxu0
      %v1356 = vadd.f32 %v1210, %v1281
      %v1357 = vadd.f32 %v1211, %v1283
      %v1358 = vadd.f32 %v1212, %v1352
      %v1359 = vadd.f32 %v1213, %v1354
      %v1360 = vmul.f32 %v1356, 0.5
      %v1361 = vtanh.pop %v1360
      %v1362 = vadd.f32 %v1361, 1.0
      %v1363 = vmul.f32 %v1362, 0.5
      %v1364 = vmul.f32 %v1357, 0.5
      %v1365 = vtanh.pop %v1364
      %v1366 = vadd.f32 %v1365, 1.0
      %v1367 = vmul.f32 %v1366, 0.5
      %v1368 = vtanh.pop %v1358
      %v1369 = vmul.f32 %v1359, 0.5
      %v1370 = vtanh.pop %v1369
      %v1371 = vadd.f32 %v1370, 1.0
      %v1372 = vmul.f32 %v1371, 0.5
      %v1373 = vmul.f32 %v1367, %v1208
      %v1374 = vmul.f32 %v1363, %v1368
      %v1375 = vadd.f32 %v1373, %v1374
      %v1376 = vtanh.pop %v1375
      %v1377 = vmul.f32 %v1372, %v1376
      %s1378 = sadd.s32 %s134, 6
      %v1379 = vstv %s1378
      %vm1380 = vcmp.lt.s32.totalorder %v1379, %v69
      %v1381 = vsel %vm1380, 1, 0
      %1382 = vset.pattern.permute.xlu0 0
      %1383 = vperm.xlu0 %1382, %v1381
      %v1384 = vpop.permute.xlu0 %1383
      %vm1385 = vcmp.eq.s32.totalorder %v1384, 1
      %v1386 = vsel %vm1385, %v1377, %v1207
      %v1387 = vsel %vm1385, %v1375, %v1208
      %s1388 = scalar_lea.vmem [#allocation6], 224
      %v1389 = vld [vmem:[%s1388] sm:$0xff]
      %v1390 = vld [vmem:[%s1388 + $0x8] sm:$0xff]
      %v1391 = vld [vmem:[%s1388 + $0x10] sm:$0xff]
      %v1392 = vld [vmem:[%s1388 + $0x18] sm:$0xff]
      %1393 = vmatprep.subr.mxu0 %v131
      %1394 = vmatpush1.msra.mxu0 %v130
      %1395 = vmatprep.subr.mxu0 %v127
      %1396 = vmatpush1.msra.mxu0 %v126
      %1397 = vmatprep.subr.mxu0 %v123
      %1398 = vmatpush1.msra.mxu0 %v122
      %1399 = vmatprep.subr.mxu0 %v119
      %1400 = vmatpush1.msra.mxu0 %v118
      %1401 = vmatprep.subr.mxu0 %v115
      %1402 = vmatpush1.msra.mxu0 %v114
      %1403 = vmatprep.subr.mxu0 %v111
      %1404 = vmatpush1.msra.mxu0 %v110
      %1405 = vmatprep.subr.mxu0 %v107
      %1406 = vmatpush1.msra.mxu0 %v106
      %1407 = vmatprep.subr.mxu0 %v103
      %1408 = vmatpush1.msra.mxu0 %v102
      %1409 = vmatprep.subr.mxu0 %v99
      %1410 = vmatpush1.msra.mxu0 %v98
      %1411 = vmatprep.subr.mxu0 %v95
      %1412 = vmatpush1.msra.mxu0 %v94
      %1413 = vmatprep.subr.mxu0 %v91
      %1414 = vmatpush1.msra.mxu0 %v90
      %1415 = vmatprep.subr.mxu0 %v87
      %1416 = vmatpush1.msra.mxu0 %v86
      %1417 = vmatprep.subr.mxu0 %v83
      %1418 = vmatpush1.msra.mxu0 %v82
      %1419 = vmatprep.subr.mxu0 %v79
      %1420 = vmatpush1.msra.mxu0 %v78
      %1421 = vmatprep.subr.mxu0 %v75
      %1422 = vmatpush1.msra.mxu0 %v74
      %1423 = vmatprep.subr.mxu0 %v71
      %1424 = vmatpush1.msra.mxu0 %v70
      %1425 = vmatprep.subr.mxu0 0.0
      %1426 = vmatpush2.msra.mxu0 0.0
      %1427 = vmatprep.subr.mxu0 0.0
      %1428 = vmatpush2.msra.mxu0 0.0
      %1429 = vmatprep.subr.mxu0 0.0
      %1430 = vmatpush2.msra.mxu0 0.0
      %1431 = vmatprep.subr.mxu0 0.0
      %1432 = vmatpush2.msra.mxu0 0.0
      %1433 = vmatprep.subr.mxu0 0.0
      %1434 = vmatpush2.msra.mxu0 0.0
      %1435 = vmatprep.subr.mxu0 0.0
      %1436 = vmatpush2.msra.mxu0 0.0
      %1437 = vmatprep.subr.mxu0 0.0
      %1438 = vmatpush2.msra.mxu0 0.0
      %1439 = vmatprep.subr.mxu0 0.0
      %1440 = vmatpush2.msra.mxu0 0.0
      %1441 = vmatprep.subr.mxu0 0.0
      %1442 = vmatpush2.msra.mxu0 0.0
      %1443 = vmatprep.subr.mxu0 0.0
      %1444 = vmatpush2.msra.mxu0 0.0
      %1445 = vmatprep.subr.mxu0 0.0
      %1446 = vmatpush2.msra.mxu0 0.0
      %1447 = vmatprep.subr.mxu0 0.0
      %1448 = vmatpush2.msra.mxu0 0.0
      %1449 = vmatprep.subr.mxu0 0.0
      %1450 = vmatpush2.msra.mxu0 0.0
      %1451 = vmatprep.subr.mxu0 0.0
      %1452 = vmatpush2.msra.mxu0 0.0
      %1453 = vmatprep.subr.mxu0 0.0
      %1454 = vmatpush2.msra.mxu0 0.0
      %1455 = vmatprep.subr.mxu0 0.0
      %1456 = vmatpush2.msra.mxu0 0.0
      %1457 = vmatprep.mubr.f32.mxu0 0.0
      %1458 = vmatmul.mubr.f32.gmra.mxu0 %v1386
      %v1459 = vpop.f32.mrf.mxu0
      %v1460 = vadd.f32 0.0, %v1459
      %v1461 = vpop.f32.mrf.mxu0
      %v1462 = vadd.f32 0.0, %v1461
      %1463 = vdwg.mxu0
      %1464 = vmatprep.subr.mxu0 %v133
      %1465 = vmatpush1.msra.mxu0 %v132
      %1466 = vmatprep.subr.mxu0 %v129
      %1467 = vmatpush1.msra.mxu0 %v128
      %1468 = vmatprep.subr.mxu0 %v125
      %1469 = vmatpush1.msra.mxu0 %v124
      %1470 = vmatprep.subr.mxu0 %v121
      %1471 = vmatpush1.msra.mxu0 %v120
      %1472 = vmatprep.subr.mxu0 %v117
      %1473 = vmatpush1.msra.mxu0 %v116
      %1474 = vmatprep.subr.mxu0 %v113
      %1475 = vmatpush1.msra.mxu0 %v112
      %1476 = vmatprep.subr.mxu0 %v109
      %1477 = vmatpush1.msra.mxu0 %v108
      %1478 = vmatprep.subr.mxu0 %v105
      %1479 = vmatpush1.msra.mxu0 %v104
      %1480 = vmatprep.subr.mxu0 %v101
      %1481 = vmatpush1.msra.mxu0 %v100
      %1482 = vmatprep.subr.mxu0 %v97
      %1483 = vmatpush1.msra.mxu0 %v96
      %1484 = vmatprep.subr.mxu0 %v93
      %1485 = vmatpush1.msra.mxu0 %v92
      %1486 = vmatprep.subr.mxu0 %v89
      %1487 = vmatpush1.msra.mxu0 %v88
      %1488 = vmatprep.subr.mxu0 %v85
      %1489 = vmatpush1.msra.mxu0 %v84
      %1490 = vmatprep.subr.mxu0 %v81
      %1491 = vmatpush1.msra.mxu0 %v80
      %1492 = vmatprep.subr.mxu0 %v77
      %1493 = vmatpush1.msra.mxu0 %v76
      %1494 = vmatprep.subr.mxu0 %v73
      %1495 = vmatpush1.msra.mxu0 %v72
      %1496 = vmatprep.subr.mxu0 0.0
      %1497 = vmatpush2.msra.mxu0 0.0
      %1498 = vmatprep.subr.mxu0 0.0
      %1499 = vmatpush2.msra.mxu0 0.0
      %1500 = vmatprep.subr.mxu0 0.0
      %1501 = vmatpush2.msra.mxu0 0.0
      %1502 = vmatprep.subr.mxu0 0.0
      %1503 = vmatpush2.msra.mxu0 0.0
      %1504 = vmatprep.subr.mxu0 0.0
      %1505 = vmatpush2.msra.mxu0 0.0
      %1506 = vmatprep.subr.mxu0 0.0
      %1507 = vmatpush2.msra.mxu0 0.0
      %1508 = vmatprep.subr.mxu0 0.0
      %1509 = vmatpush2.msra.mxu0 0.0
      %1510 = vmatprep.subr.mxu0 0.0
      %1511 = vmatpush2.msra.mxu0 0.0
      %1512 = vmatprep.subr.mxu0 0.0
      %1513 = vmatpush2.msra.mxu0 0.0
      %1514 = vmatprep.subr.mxu0 0.0
      %1515 = vmatpush2.msra.mxu0 0.0
      %1516 = vmatprep.subr.mxu0 0.0
      %1517 = vmatpush2.msra.mxu0 0.0
      %1518 = vmatprep.subr.mxu0 0.0
      %1519 = vmatpush2.msra.mxu0 0.0
      %1520 = vmatprep.subr.mxu0 0.0
      %1521 = vmatpush2.msra.mxu0 0.0
      %1522 = vmatprep.subr.mxu0 0.0
      %1523 = vmatpush2.msra.mxu0 0.0
      %1524 = vmatprep.subr.mxu0 0.0
      %1525 = vmatpush2.msra.mxu0 0.0
      %1526 = vmatprep.subr.mxu0 0.0
      %1527 = vmatpush2.msra.mxu0 0.0
      %1528 = vmatprep.mubr.f32.mxu0 0.0
      %1529 = vmatmul.mubr.f32.gmra.mxu0 %v1386
      %v1530 = vpop.f32.mrf.mxu0
      %v1531 = vadd.f32 0.0, %v1530
      %v1532 = vpop.f32.mrf.mxu0
      %v1533 = vadd.f32 0.0, %v1532
      %1534 = vdwg.mxu0
      %v1535 = vadd.f32 %v1389, %v1460
      %v1536 = vadd.f32 %v1390, %v1462
      %v1537 = vadd.f32 %v1391, %v1531
      %v1538 = vadd.f32 %v1392, %v1533
      %v1539 = vmul.f32 %v1535, 0.5
      %v1540 = vtanh.pop %v1539
      %v1541 = vadd.f32 %v1540, 1.0
      %v1542 = vmul.f32 %v1541, 0.5
      %v1543 = vmul.f32 %v1536, 0.5
      %v1544 = vtanh.pop %v1543
      %v1545 = vadd.f32 %v1544, 1.0
      %v1546 = vmul.f32 %v1545, 0.5
      %v1547 = vtanh.pop %v1537
      %v1548 = vmul.f32 %v1538, 0.5
      %v1549 = vtanh.pop %v1548
      %v1550 = vadd.f32 %v1549, 1.0
      %v1551 = vmul.f32 %v1550, 0.5
      %v1552 = vmul.f32 %v1546, %v1387
      %v1553 = vmul.f32 %v1542, %v1547
      %v1554 = vadd.f32 %v1552, %v1553
      %v1555 = vtanh.pop %v1554
      %v1556 = vmul.f32 %v1551, %v1555
      %s1557 = sadd.s32 %s134, 7
      %v1558 = vstv %s1557
      %vm1559 = vcmp.lt.s32.totalorder %v1558, %v69
      %v1560 = vsel %vm1559, 1, 0
      %1561 = vset.pattern.permute.xlu0 0
      %1562 = vperm.xlu0 %1561, %v1560
      %v1563 = vpop.permute.xlu0 %1562
      %vm1564 = vcmp.eq.s32.totalorder %v1563, 1
      %v1565 = vsel %vm1564, %v1556, %v1386
      %v1566 = vsel %vm1564, %v1554, %v1387
      %1567 = vst [vmem:[#allocation2] sm:$0xff] %v1565
      %1568 = vst [vmem:[#allocation3] sm:$0xff] %v1566
      %1569 = vst [vmem:[#allocation11] sm:$0xff] %v1565
    $region29: #{tpu_custom_call.1} parent=1 // pred_fallthru
      _
    // Predicated region
    $region30: #{tpu_custom_call.1} parent=1 // pred_check
      _
    $region31: #{tpu_custom_call.1} parent=1 // pred_check_branch
      %1571 = sbr.rel (0) target = $region33
    $region32: #{tpu_custom_call.1} parent=1 // pred_region
      %s1573 = ssub.s32 128, 128
      %1574 = vsyncadd [#allocation8], %s1573
      %s1576 = sshll.u32 [#allocation11], 4
      %s1577 = int_to_ptr.vmem [resolvable:$true] %s1576
      %1579 = dma.vmem_to_hbm [thread:$0]  %s1577, 128, %s4, [#allocation8]
    $region33: #{tpu_custom_call.1} parent=1 // pred_fallthru
      _
    // Predicated region
    $region34: #{tpu_custom_call.1} parent=1 // pred_check
      _
    $region35: #{tpu_custom_call.1} parent=1 // pred_check_branch
      %1581 = sbr.rel (0) target = $region37
    $region36: #{tpu_custom_call.1} parent=1 // pred_region
      %1582 = dma.done [#allocation8], 128
    $region37: #{tpu_custom_call.1} parent=1 // pred_fallthru
      _
    %1583 = vsyncpa [#allocation7], 1
    %1584 = vsyncpa [#allocation10], 1
    %1585 = vsyncpa [#allocation8], 1

</llo_original>
